<compile_context>
chip_gen: v6e
topology: v6e:2x2x1
jax: 0.10.0
libtpu: 0.0.40
codegen_flags: <defaults>
</compile_context>

<pallas_src>
import functools
import math

import jax
import jax.numpy as jnp
from jax import lax
from jax.experimental import pallas as pl
from jax.experimental.pallas import tpu as pltpu


def _flash_attn_kernel(qi_tbl_ref, ki_tbl_ref,       # scalar prefetch (SMEM)
                       q_ref, k_ref, v_ref,          # (1, H, blk, Dh) VMEM tiles
                       o_ref,                        # (1, blk, H*Dh) output tile
                       m_sc, l_sc, acc_sc,           # VMEM scratch
                       *, num_heads):
    """grid = (batch, n_tri) where n_tri enumerates causally-live (qi, ki)
    tile pairs in row-major lower-triangular order (ki innermost), so the
    online-softmax accumulator for a q-block is carried over consecutive
    steps and the diagonal tile is always the last kv step of its group."""
    t = pl.program_id(1)
    qi = qi_tbl_ref[t]
    ki = ki_tbl_ref[t]
    bq = q_ref.shape[2]
    bk = k_ref.shape[2]
    cdt = q_ref.dtype                       # MXU operand dtype (== input dtype)
    neg_big = jnp.float32(-10000000000.0)   # same sentinel as the PyTorch module

    @pl.when(ki == 0)
    def _init():
        m_sc[...] = jnp.full(m_sc.shape, -jnp.inf, dtype=m_sc.dtype)
        l_sc[...] = jnp.zeros(l_sc.shape, dtype=l_sc.dtype)
        acc_sc[...] = jnp.zeros(acc_sc.shape, dtype=acc_sc.dtype)

    def _attend(masked):
        q = q_ref[0]                                    # (H, bq, Dh)
        k = k_ref[0]                                    # (H, bk, Dh)
        v = v_ref[0]                                    # (H, bk, Dh)
        # Head-batched QK^T: one MXU dot_general, no per-head lane slicing.
        s = jnp.einsum('hqd,hkd->hqk', q, k,
                       preferred_element_type=jnp.float32)   # (H, bq, bk) f32
        if masked:
            # Diagonal tile only: local lower-triangular mask (bq == bk).
            row = lax.broadcasted_iota(jnp.int32, (bq, bk), 0)
            col = lax.broadcasted_iota(jnp.int32, (bq, bk), 1)
            s = jnp.where((row >= col)[None], s, neg_big)

        m_prev = m_sc[...]                                    # (H, bq, 1)
        m_new = jnp.maximum(m_prev, jnp.max(s, axis=-1, keepdims=True))
        alpha = jnp.exp(m_prev - m_new)
        p = jnp.exp(s - m_new)                                # (H, bq, bk) f32
        l_sc[...] = alpha * l_sc[...] + jnp.sum(p, axis=-1, keepdims=True)
        acc_sc[...] = alpha * acc_sc[...] + jnp.einsum(
            'hqk,hkd->hqd', p.astype(cdt), v,
            preferred_element_type=jnp.float32)
        m_sc[...] = m_new

    # Interior kv tiles (strictly below the diagonal): unmasked fast path.
    @pl.when(ki < qi)
    def _interior():
        _attend(masked=False)

    # Diagonal tile: masked compute, then finalize (always the last kv step
    # for this q-block under the triangular schedule).
    @pl.when(ki == qi)
    def _diag_and_finalize():
        _attend(masked=True)
        # Normalize after the PV matmul; approximate reciprocal runs on the
        # (otherwise idle) EUP slot.
        inv_l = pl.reciprocal(l_sc[...], approx=True)         # (H, bq, 1)
        z = acc_sc[...] * inv_l                               # (H, bq, Dh) f32
        # Single per-q-block relayout into the lane-dense 'b q (i h)' slab
        # (no per-kv-step head slicing anywhere above).
        z = jnp.concatenate([z[h] for h in range(num_heads)], axis=-1)
        o_ref[0] = z.astype(o_ref.dtype)


def _vmem_budget_bytes():
    try:
        return int(pltpu.get_tpu_info().vmem_capacity_bytes)
    except Exception:
        return 64 * 1024 * 1024          # conservative fallback (v7x-sized)


def _choose_block(n_ctx, num_heads, d_head, itemsize, scratch_budget):
    """Largest square tile whose rough per-step working set fits the budget."""
    hd = num_heads * d_head
    for blk in (512, 256, 128):
        if n_ctx < blk or n_ctx % blk:
            continue
        need = (3 * 2 * blk * hd * itemsize          # q/k/v tiles, double-buffered
                + 2 * blk * hd * itemsize            # output tile, double-buffered
                + blk * hd * 4 + 2 * num_heads * blk * 4   # acc + m + l scratch
                + 3 * num_heads * blk * blk * 4)     # s / p f32 temporaries
        if need <= scratch_budget:
            return blk
    return n_ctx   # small / odd n_ctx: single full-extent block


def attention_forward(x, w_k, w_q, w_v, *, scaled=False, block=None):
    """x: (b, n_ctx, d_model); w_*: (num_heads, d_head, d_model).
    Returns (b, n_ctx, num_heads * d_head), matching the PyTorch forward."""
    b, n_ctx, d_model = x.shape
    num_heads, d_head, _ = w_k.shape
    hd = num_heads * d_head
    dt = x.dtype
    itemsize = jnp.dtype(dt).itemsize

    # ---- Hoisted projections (one lane-dense GEMM each, 'biph' layout) ----
    # The softmax scale is folded into W_Q: scaling the weight is free and
    # removes any per-token scaling work.  (Masked logits then sit at -1e10
    # instead of -1e10/sqrt(d_head); both underflow to 0 after softmax.)
    if scaled:
        w_q = w_q * jnp.asarray(1.0 / math.sqrt(d_head), w_q.dtype)
    q = jnp.einsum('ihd,bpd->biph', w_q, x).astype(dt)   # (b, H, n_ctx, Dh)
    k = jnp.einsum('ihd,bpd->biph', w_k, x).astype(dt)
    v = jnp.einsum('ihd,bpd->biph', w_v, x).astype(dt)

    # ---- Tiling -------------------------------------------------------------
    vmem_budget = _vmem_budget_bytes()
    vmem_limit = int(min(0.75 * vmem_budget, 100 * 2**20))   # 48 MiB on v7x, 96 MiB on v5e/v6e
    if block is None:
        block = _choose_block(n_ctx, num_heads, d_head, itemsize,
                              scratch_budget=int(0.6 * vmem_limit))
    assert n_ctx % block == 0, "n_ctx must be divisible by the block size"
    n_blk = n_ctx // block

    # Flattened lower-triangular schedule: only causally-live (qi, ki) tiles
    # become grid steps (kv index innermost so the accumulator stays resident).
    qi_idx, ki_idx = [], []
    for q_i in range(n_blk):
        for k_i in range(q_i + 1):
            qi_idx.append(q_i)
            ki_idx.append(k_i)
    qi_tbl = jnp.asarray(qi_idx, dtype=jnp.int32)
    ki_tbl = jnp.asarray(ki_idx, dtype=jnp.int32)
    n_tri = len(qi_idx)

    kernel = functools.partial(_flash_attn_kernel, num_heads=num_heads)

    causal_elems = b * num_heads * n_ctx * (n_ctx + 1) // 2
    cost = pl.CostEstimate(
        flops=int(4 * causal_elems * d_head),
        transcendentals=int(causal_elems),
        bytes_accessed=int(itemsize * (b * n_ctx * hd             # q
                                       + 2 * b * hd * block * n_tri  # k/v tiles
                                       + b * n_ctx * hd)),         # output
    )

    out = pl.pallas_call(
        kernel,
        out_shape=jax.ShapeDtypeStruct((b, n_ctx, hd), dt),
        grid_spec=pltpu.PrefetchScalarGridSpec(
            num_scalar_prefetch=2,
            grid=(b, n_tri),
            in_specs=[
                # Q tile: re-used across all kv steps of a q-block (same block
                # index -> no re-DMA).
                pl.BlockSpec((1, num_heads, block, d_head),
                             lambda bi, t, qi_t, ki_t: (bi, 0, qi_t[t], 0)),
                # K / V tiles follow the triangular kv schedule.  Default
                # double-buffering is kept; raise to pl.Buffered(3) only if
                # the (now lighter) per-step compute stops hiding the copy.
                pl.BlockSpec((1, num_heads, block, d_head),
                             lambda bi, t, qi_t, ki_t: (bi, 0, ki_t[t], 0)),
                pl.BlockSpec((1, num_heads, block, d_head),
                             lambda bi, t, qi_t, ki_t: (bi, 0, ki_t[t], 0)),
            ],
            # Lane-dense output slab in 'b q (i h)' order, written once per
            # q-block (block index only changes when qi changes).
            out_specs=pl.BlockSpec((1, block, hd),
                                   lambda bi, t, qi_t, ki_t: (bi, qi_t[t], 0)),
            scratch_shapes=[
                pltpu.VMEM((num_heads, block, 1), jnp.float32),        # m
                pltpu.VMEM((num_heads, block, 1), jnp.float32),        # l
                pltpu.VMEM((num_heads, block, d_head), jnp.float32),   # acc
            ],
        ),
        compiler_params=pltpu.CompilerParams(
            # Batch axis is parallel (feeds both TensorCores on v7x when b>=2);
            # the flattened triangular axis carries the online-softmax
            # accumulator and must stay 'arbitrary'.
            dimension_semantics=("parallel", "arbitrary"),
            vmem_limit_bytes=vmem_limit,
        ),
        cost_estimate=cost,
    )(qi_tbl, ki_tbl, q, k, v)

    # Output is already in 'b q (i h)' layout: no transpose/reshape needed.
    # TODO(synk): the PyTorch set_attention_matrix buffer write (mean of the
    # full attention matrix over the batch) is a host-side side effect on a
    # registered buffer; a flash kernel never materializes that matrix, so it
    # is not replicated here.
    return out


def _reference_forward(x, w_k, w_q, w_v, *, scaled=False, d_head=None):
    """Pure-JAX reference mirroring the PyTorch einsums, for verification."""
    k = jnp.einsum("ihd,bpd->biph", w_k, x)
    q = jnp.einsum("ihd,bpd->biph", w_q, x)
    v = jnp.einsum("ihd,bpd->biph", w_v, x)
    scores = jnp.einsum("biph,biqh->biqp", k, q)
    n = x.shape[-2]
    mask = jnp.tril(jnp.ones((n, n), dtype=x.dtype))
    masked = jnp.tril(scores) - 10000000000.0 * (1 - mask)
    if scaled:
        masked = masked / jnp.sqrt(jnp.float32(d_head))
    attn = jax.nn.softmax(masked, axis=-1)
    z = jnp.einsum("biph,biqp->biqh", v, attn)
    b, i, qn, h = z.shape
    return jnp.transpose(z, (0, 2, 1, 3)).reshape(b, qn, i * h)


if __name__ == "__main__":
    # Small shapes consistent with the module: b=2, n_ctx=16, d_model=32,
    # num_heads=4, d_head=8.
    batch, n_ctx, d_model, num_heads, d_head = 2, 16, 32, 4, 8

    key = jax.random.PRNGKey(0)
    kx, kk, kq, kv = jax.random.split(key, 4)

    x = jax.random.normal(kx, (batch, n_ctx, d_model), dtype=jnp.float32)
    scale = 1.0 / math.sqrt(d_model)
    w_k = jax.random.normal(kk, (num_heads, d_head, d_model), jnp.float32) * scale
    w_q = jax.random.normal(kq, (num_heads, d_head, d_model), jnp.float32) * scale
    w_v = jax.random.normal(kv, (num_heads, d_head, d_model), jnp.float32) * scale

    # Tolerance is loose enough to absorb the approximate EUP reciprocal used
    # for the final softmax normalization and online-softmax reordering.
    TOL = 1e-2

    ok = True
    # 1) scaled=False / 2) scaled=True at the default (full-extent) block;
    # 3) block=8 to also exercise the multi-tile triangular schedule
    #    (init, unmasked interior tile, masked diagonal tile, finalize).
    for scaled, blk in ((False, None), (True, None), (False, 8)):
        out = attention_forward(x, w_k, w_q, w_v, scaled=scaled, block=blk)
        out = jax.block_until_ready(out)
        ref = _reference_forward(x, w_k, w_q, w_v, scaled=scaled, d_head=d_head)
        assert out.shape == (batch, n_ctx, num_heads * d_head)
        ok = ok and bool(jnp.allclose(out, ref, atol=TOL, rtol=TOL))

    assert ok
    print("KERNEL_OK")
</pallas_src>

<mosaic_0001>
module attributes {stable_mosaic.version = 11 : i64} {
  func.func @_flash_attn_kernel(%arg0: i32, %arg1: i32, %arg2: memref<1xi32, #tpu.memory_space<smem>>, %arg3: memref<1xi32, #tpu.memory_space<smem>>, %arg4: memref<1x4x16x8xf32, #tpu.memory_space<vmem>>, %arg5: memref<1x4x16x8xf32, #tpu.memory_space<vmem>>, %arg6: memref<1x4x16x8xf32, #tpu.memory_space<vmem>>, %arg7: memref<1x16x32xf32, #tpu.memory_space<vmem>>, %arg8: memref<4x16x1xf32, #tpu.memory_space<vmem>>, %arg9: memref<4x16x1xf32, #tpu.memory_space<vmem>>, %arg10: memref<4x16x8xf32, #tpu.memory_space<vmem>>) attributes {dimension_semantics = [#tpu.dimension_semantics<parallel>, #tpu.dimension_semantics<arbitrary>], iteration_bounds = array<i64: 2, 1>, scalar_prefetch = 2 : i64, scratch_operands = 3 : i64, tpu.core_type = #tpu.core_type<tc>, window_params = [{transform_indices = @transform_0, window_bounds = array<i64: 1, 4, 16, 8>}, {transform_indices = @transform_1, window_bounds = array<i64: 1, 4, 16, 8>}, {transform_indices = @transform_2, window_bounds = array<i64: 1, 4, 16, 8>}, {transform_indices = @transform_3, window_bounds = array<i64: 1, 16, 32>}]} {
    %0 = arith.index_cast %arg1 : i32 to index
    %1 = memref.load %arg2[%0] : memref<1xi32, #tpu.memory_space<smem>>
    %2 = arith.index_cast %arg1 : i32 to index
    %3 = memref.load %arg3[%2] : memref<1xi32, #tpu.memory_space<smem>>
    %c0_i32 = arith.constant 0 : i32
    %4 = arith.cmpi eq, %3, %c0_i32 : i32
    %5 = arith.extui %4 : i1 to i32
    %c0_i32_0 = arith.constant 0 : i32
    %6 = arith.cmpi ne, %5, %c0_i32_0 : i32
    scf.if %6 {
      %cst_3 = arith.constant 0xFF800000 : f32
      %13 = vector.broadcast %cst_3 : f32 to vector<4x16x1xf32>
      %c0 = arith.constant 0 : index
      %c0_4 = arith.constant 0 : index
      %c0_5 = arith.constant 0 : index
      %14 = vector.load %arg8[%c0, %c0_4, %c0_5] : memref<4x16x1xf32, #tpu.memory_space<vmem>>, vector<4x16x1xf32>
      tpu.vector_store %arg8[%c0, %c0_4, %c0_5], %13 {strides = array<i32>} : memref<4x16x1xf32, #tpu.memory_space<vmem>>, vector<4x16x1xf32>,
      %cst_6 = arith.constant 0.000000e+00 : f32
      %15 = vector.broadcast %cst_6 : f32 to vector<4x16x1xf32>
      %c0_7 = arith.constant 0 : index
      %c0_8 = arith.constant 0 : index
      %c0_9 = arith.constant 0 : index
      %16 = vector.load %arg9[%c0_7, %c0_8, %c0_9] : memref<4x16x1xf32, #tpu.memory_space<vmem>>, vector<4x16x1xf32>
      tpu.vector_store %arg9[%c0_7, %c0_8, %c0_9], %15 {strides = array<i32>} : memref<4x16x1xf32, #tpu.memory_space<vmem>>, vector<4x16x1xf32>,
      %cst_10 = arith.constant 0.000000e+00 : f32
      %17 = vector.broadcast %cst_10 : f32 to vector<4x16x8xf32>
      %c0_11 = arith.constant 0 : index
      %c0_12 = arith.constant 0 : index
      %c0_13 = arith.constant 0 : index
      %18 = vector.load %arg10[%c0_11, %c0_12, %c0_13] : memref<4x16x8xf32, #tpu.memory_space<vmem>>, vector<4x16x8xf32>
      tpu.vector_store %arg10[%c0_11, %c0_12, %c0_13], %17 {strides = array<i32>} : memref<4x16x8xf32, #tpu.memory_space<vmem>>, vector<4x16x8xf32>,
    } else {
    }
    %7 = arith.cmpi slt, %3, %1 : i32
    %8 = arith.extui %7 : i1 to i32
    %c0_i32_1 = arith.constant 0 : i32
    %9 = arith.cmpi ne, %8, %c0_i32_1 : i32
    scf.if %9 {
      %c0 = arith.constant 0 : index
      %c0_3 = arith.constant 0 : index
      %c0_4 = arith.constant 0 : index
      %c0_5 = arith.constant 0 : index
      %13 = vector.load %arg4[%c0, %c0_3, %c0_4, %c0_5] : memref<1x4x16x8xf32, #tpu.memory_space<vmem>>, vector<1x4x16x8xf32>
      %14 = vector.shape_cast %13 : vector<1x4x16x8xf32> to vector<4x16x8xf32>
      %c0_6 = arith.constant 0 : index
      %c0_7 = arith.constant 0 : index
      %c0_8 = arith.constant 0 : index
      %c0_9 = arith.constant 0 : index
      %15 = vector.load %arg5[%c0_6, %c0_7, %c0_8, %c0_9] : memref<1x4x16x8xf32, #tpu.memory_space<vmem>>, vector<1x4x16x8xf32>
      %16 = vector.shape_cast %15 : vector<1x4x16x8xf32> to vector<4x16x8xf32>
      %c0_10 = arith.constant 0 : index
      %c0_11 = arith.constant 0 : index
      %c0_12 = arith.constant 0 : index
      %c0_13 = arith.constant 0 : index
      %17 = vector.load %arg6[%c0_10, %c0_11, %c0_12, %c0_13] : memref<1x4x16x8xf32, #tpu.memory_space<vmem>>, vector<1x4x16x8xf32>
      %18 = vector.shape_cast %17 : vector<1x4x16x8xf32> to vector<4x16x8xf32>
      "tpu.trace_start"() <{level = 10 : i32, message = "hqd,hkd->hqk"}> : () -> ()
      %cst_14 = arith.constant dense<0.000000e+00> : vector<4x16x16xf32>
      %19 = tpu.matmul %14, %16, %cst_14 {dimension_numbers = #tpu.dot_dimension_numbers<[2], [2], [1], [1], [0, 0, 0, 1, 1, 1], [0], [0]>} : vector<4x16x8xf32>, vector<4x16x8xf32>, vector<4x16x16xf32> -> vector<4x16x16xf32>
      "tpu.trace_stop"() : () -> ()
      %c0_15 = arith.constant 0 : index
      %c0_16 = arith.constant 0 : index
      %c0_17 = arith.constant 0 : index
      %20 = vector.load %arg8[%c0_15, %c0_16, %c0_17] : memref<4x16x1xf32, #tpu.memory_space<vmem>>, vector<4x16x1xf32>
      %cst_18 = arith.constant dense<0xFF800000> : vector<4x16xf32>
      %21 = vector.multi_reduction <maximumf>, %19, %cst_18 [2] : vector<4x16x16xf32> to vector<4x16xf32>
      %22 = vector.shape_cast %21 : vector<4x16xf32> to vector<4x16x1xf32>
      %23 = arith.maximumf %20, %22 : vector<4x16x1xf32>
      %24 = arith.subf %20, %23 : vector<4x16x1xf32>
      %25 = math.exp %24 : vector<4x16x1xf32>
      %26 = vector.broadcast %23 : vector<4x16x1xf32> to vector<4x16x16xf32>
      %27 = arith.subf %19, %26 : vector<4x16x16xf32>
      %28 = math.exp %27 : vector<4x16x16xf32>
      %c0_19 = arith.constant 0 : index
      %c0_20 = arith.constant 0 : index
      %c0_21 = arith.constant 0 : index
      %29 = vector.load %arg9[%c0_19, %c0_20, %c0_21] : memref<4x16x1xf32, #tpu.memory_space<vmem>>, vector<4x16x1xf32>
      %30 = arith.mulf %25, %29 : vector<4x16x1xf32>
      %cst_22 = arith.constant dense<0.000000e+00> : vector<4x16xf32>
      %31 = vector.multi_reduction <add>, %28, %cst_22 [2] : vector<4x16x16xf32> to vector<4x16xf32>
      %32 = vector.shape_cast %31 : vector<4x16xf32> to vector<4x16x1xf32>
      %33 = arith.addf %30, %32 : vector<4x16x1xf32>
      %c0_23 = arith.constant 0 : index
      %c0_24 = arith.constant 0 : index
      %c0_25 = arith.constant 0 : index
      %34 = vector.load %arg9[%c0_23, %c0_24, %c0_25] : memref<4x16x1xf32, #tpu.memory_space<vmem>>, vector<4x16x1xf32>
      tpu.vector_store %arg9[%c0_23, %c0_24, %c0_25], %33 {strides = array<i32>} : memref<4x16x1xf32, #tpu.memory_space<vmem>>, vector<4x16x1xf32>,
      %c0_26 = arith.constant 0 : index
      %c0_27 = arith.constant 0 : index
      %c0_28 = arith.constant 0 : index
      %35 = vector.load %arg10[%c0_26, %c0_27, %c0_28] : memref<4x16x8xf32, #tpu.memory_space<vmem>>, vector<4x16x8xf32>
      %36 = vector.broadcast %25 : vector<4x16x1xf32> to vector<4x16x8xf32>
      %37 = arith.mulf %36, %35 : vector<4x16x8xf32>
      "tpu.trace_start"() <{level = 10 : i32, message = "hqk,hkd->hqd"}> : () -> ()
      %cst_29 = arith.constant dense<0.000000e+00> : vector<4x16x8xf32>
      %38 = tpu.matmul %28, %18, %cst_29 {dimension_numbers = #tpu.dot_dimension_numbers<[2], [1], [1], [2], [0, 0, 0, 1, 1, 2], [0], [0]>} : vector<4x16x16xf32>, vector<4x16x8xf32>, vector<4x16x8xf32> -> vector<4x16x8xf32>
      "tpu.trace_stop"() : () -> ()
      %39 = arith.addf %37, %38 : vector<4x16x8xf32>
      %c0_30 = arith.constant 0 : index
      %c0_31 = arith.constant 0 : index
      %c0_32 = arith.constant 0 : index
      %40 = vector.load %arg10[%c0_30, %c0_31, %c0_32] : memref<4x16x8xf32, #tpu.memory_space<vmem>>, vector<4x16x8xf32>
      tpu.vector_store %arg10[%c0_30, %c0_31, %c0_32], %39 {strides = array<i32>} : memref<4x16x8xf32, #tpu.memory_space<vmem>>, vector<4x16x8xf32>,
      %c0_33 = arith.constant 0 : index
      %c0_34 = arith.constant 0 : index
      %c0_35 = arith.constant 0 : index
      %41 = vector.load %arg8[%c0_33, %c0_34, %c0_35] : memref<4x16x1xf32, #tpu.memory_space<vmem>>, vector<4x16x1xf32>
      tpu.vector_store %arg8[%c0_33, %c0_34, %c0_35], %23 {strides = array<i32>} : memref<4x16x1xf32, #tpu.memory_space<vmem>>, vector<4x16x1xf32>,
    } else {
    }
    %10 = arith.cmpi eq, %3, %1 : i32
    %11 = arith.extui %10 : i1 to i32
    %cst = arith.constant -1.000000e+10 : f32
    %c0_i32_2 = arith.constant 0 : i32
    %12 = arith.cmpi ne, %11, %c0_i32_2 : i32
    scf.if %12 {
      %c0 = arith.constant 0 : index
      %c0_3 = arith.constant 0 : index
      %c0_4 = arith.constant 0 : index
      %c0_5 = arith.constant 0 : index
      %13 = vector.load %arg4[%c0, %c0_3, %c0_4, %c0_5] : memref<1x4x16x8xf32, #tpu.memory_space<vmem>>, vector<1x4x16x8xf32>
      %14 = vector.shape_cast %13 : vector<1x4x16x8xf32> to vector<4x16x8xf32>
      %c0_6 = arith.constant 0 : index
      %c0_7 = arith.constant 0 : index
      %c0_8 = arith.constant 0 : index
      %c0_9 = arith.constant 0 : index
      %15 = vector.load %arg5[%c0_6, %c0_7, %c0_8, %c0_9] : memref<1x4x16x8xf32, #tpu.memory_space<vmem>>, vector<1x4x16x8xf32>
      %16 = vector.shape_cast %15 : vector<1x4x16x8xf32> to vector<4x16x8xf32>
      %c0_10 = arith.constant 0 : index
      %c0_11 = arith.constant 0 : index
      %c0_12 = arith.constant 0 : index
      %c0_13 = arith.constant 0 : index
      %17 = vector.load %arg6[%c0_10, %c0_11, %c0_12, %c0_13] : memref<1x4x16x8xf32, #tpu.memory_space<vmem>>, vector<1x4x16x8xf32>
      %18 = vector.shape_cast %17 : vector<1x4x16x8xf32> to vector<4x16x8xf32>
      "tpu.trace_start"() <{level = 10 : i32, message = "hqd,hkd->hqk"}> : () -> ()
      %cst_14 = arith.constant dense<0.000000e+00> : vector<4x16x16xf32>
      %19 = tpu.matmul %14, %16, %cst_14 {dimension_numbers = #tpu.dot_dimension_numbers<[2], [2], [1], [1], [0, 0, 0, 1, 1, 1], [0], [0]>} : vector<4x16x8xf32>, vector<4x16x8xf32>, vector<4x16x16xf32> -> vector<4x16x16xf32>
      "tpu.trace_stop"() : () -> ()
      %20 = tpu.iota {dimensions = array<i32: 0>} : vector<16x16xi32>
      %21 = tpu.iota {dimensions = array<i32: 1>} : vector<16x16xi32>
      %22 = arith.cmpi sge, %20, %21 : vector<16x16xi32>
      %23 = vector.shape_cast %22 : vector<16x16xi1> to vector<1x16x16xi1>
      %24 = vector.shape_cast %23 : vector<1x16x16xi1> to vector<1x16x16xi1>
      %25 = vector.broadcast %24 : vector<1x16x16xi1> to vector<4x16x16xi1>
      %26 = vector.broadcast %cst : f32 to vector<4x16x16xf32>
      %27 = arith.select %25, %19, %26 : vector<4x16x16xi1>, vector<4x16x16xf32>
      %c0_15 = arith.constant 0 : index
      %c0_16 = arith.constant 0 : index
      %c0_17 = arith.constant 0 : index
      %28 = vector.load %arg8[%c0_15, %c0_16, %c0_17] : memref<4x16x1xf32, #tpu.memory_space<vmem>>, vector<4x16x1xf32>
      %cst_18 = arith.constant dense<0xFF800000> : vector<4x16xf32>
      %29 = vector.multi_reduction <maximumf>, %27, %cst_18 [2] : vector<4x16x16xf32> to vector<4x16xf32>
      %30 = vector.shape_cast %29 : vector<4x16xf32> to vector<4x16x1xf32>
      %31 = arith.maximumf %28, %30 : vector<4x16x1xf32>
      %32 = arith.subf %28, %31 : vector<4x16x1xf32>
      %33 = math.exp %32 : vector<4x16x1xf32>
      %34 = vector.broadcast %31 : vector<4x16x1xf32> to vector<4x16x16xf32>
      %35 = arith.subf %27, %34 : vector<4x16x16xf32>
      %36 = math.exp %35 : vector<4x16x16xf32>
      %c0_19 = arith.constant 0 : index
      %c0_20 = arith.constant 0 : index
      %c0_21 = arith.constant 0 : index
      %37 = vector.load %arg9[%c0_19, %c0_20, %c0_21] : memref<4x16x1xf32, #tpu.memory_space<vmem>>, vector<4x16x1xf32>
      %38 = arith.mulf %33, %37 : vector<4x16x1xf32>
      %cst_22 = arith.constant dense<0.000000e+00> : vector<4x16xf32>
      %39 = vector.multi_reduction <add>, %36, %cst_22 [2] : vector<4x16x16xf32> to vector<4x16xf32>
      %40 = vector.shape_cast %39 : vector<4x16xf32> to vector<4x16x1xf32>
      %41 = arith.addf %38, %40 : vector<4x16x1xf32>
      %c0_23 = arith.constant 0 : index
      %c0_24 = arith.constant 0 : index
      %c0_25 = arith.constant 0 : index
      %42 = vector.load %arg9[%c0_23, %c0_24, %c0_25] : memref<4x16x1xf32, #tpu.memory_space<vmem>>, vector<4x16x1xf32>
      tpu.vector_store %arg9[%c0_23, %c0_24, %c0_25], %41 {strides = array<i32>} : memref<4x16x1xf32, #tpu.memory_space<vmem>>, vector<4x16x1xf32>,
      %c0_26 = arith.constant 0 : index
      %c0_27 = arith.constant 0 : index
      %c0_28 = arith.constant 0 : index
      %43 = vector.load %arg10[%c0_26, %c0_27, %c0_28] : memref<4x16x8xf32, #tpu.memory_space<vmem>>, vector<4x16x8xf32>
      %44 = vector.broadcast %33 : vector<4x16x1xf32> to vector<4x16x8xf32>
      %45 = arith.mulf %44, %43 : vector<4x16x8xf32>
      "tpu.trace_start"() <{level = 10 : i32, message = "hqk,hkd->hqd"}> : () -> ()
      %cst_29 = arith.constant dense<0.000000e+00> : vector<4x16x8xf32>
      %46 = tpu.matmul %36, %18, %cst_29 {dimension_numbers = #tpu.dot_dimension_numbers<[2], [1], [1], [2], [0, 0, 0, 1, 1, 2], [0], [0]>} : vector<4x16x16xf32>, vector<4x16x8xf32>, vector<4x16x8xf32> -> vector<4x16x8xf32>
      "tpu.trace_stop"() : () -> ()
      %47 = arith.addf %45, %46 : vector<4x16x8xf32>
      %c0_30 = arith.constant 0 : index
      %c0_31 = arith.constant 0 : index
      %c0_32 = arith.constant 0 : index
      %48 = vector.load %arg10[%c0_30, %c0_31, %c0_32] : memref<4x16x8xf32, #tpu.memory_space<vmem>>, vector<4x16x8xf32>
      tpu.vector_store %arg10[%c0_30, %c0_31, %c0_32], %47 {strides = array<i32>} : memref<4x16x8xf32, #tpu.memory_space<vmem>>, vector<4x16x8xf32>,
      %c0_33 = arith.constant 0 : index
      %c0_34 = arith.constant 0 : index
      %c0_35 = arith.constant 0 : index
      %49 = vector.load %arg8[%c0_33, %c0_34, %c0_35] : memref<4x16x1xf32, #tpu.memory_space<vmem>>, vector<4x16x1xf32>
      tpu.vector_store %arg8[%c0_33, %c0_34, %c0_35], %31 {strides = array<i32>} : memref<4x16x1xf32, #tpu.memory_space<vmem>>, vector<4x16x1xf32>,
      %c0_36 = arith.constant 0 : index
      %c0_37 = arith.constant 0 : index
      %c0_38 = arith.constant 0 : index
      %50 = vector.load %arg9[%c0_36, %c0_37, %c0_38] : memref<4x16x1xf32, #tpu.memory_space<vmem>>, vector<4x16x1xf32>
      %51 = tpu.reciprocal %50 {approx = true} : vector<4x16x1xf32> -> vector<4x16x1xf32>
      %c0_39 = arith.constant 0 : index
      %c0_40 = arith.constant 0 : index
      %c0_41 = arith.constant 0 : index
      %52 = vector.load %arg10[%c0_39, %c0_40, %c0_41] : memref<4x16x8xf32, #tpu.memory_space<vmem>>, vector<4x16x8xf32>
      %53 = vector.broadcast %51 : vector<4x16x1xf32> to vector<4x16x8xf32>
      %54 = arith.mulf %52, %53 : vector<4x16x8xf32>
      %55 = vector.extract_strided_slice %54 {offsets = [0, 0, 0], sizes = [1, 16, 8], strides = [1, 1, 1]} : vector<4x16x8xf32> to vector<1x16x8xf32>
      %56 = vector.shape_cast %55 : vector<1x16x8xf32> to vector<16x8xf32>
      %57 = vector.extract_strided_slice %54 {offsets = [1, 0, 0], sizes = [1, 16, 8], strides = [1, 1, 1]} : vector<4x16x8xf32> to vector<1x16x8xf32>
      %58 = vector.shape_cast %57 : vector<1x16x8xf32> to vector<16x8xf32>
      %59 = vector.extract_strided_slice %54 {offsets = [2, 0, 0], sizes = [1, 16, 8], strides = [1, 1, 1]} : vector<4x16x8xf32> to vector<1x16x8xf32>
      %60 = vector.shape_cast %59 : vector<1x16x8xf32> to vector<16x8xf32>
      %61 = vector.extract_strided_slice %54 {offsets = [3, 0, 0], sizes = [1, 16, 8], strides = [1, 1, 1]} : vector<4x16x8xf32> to vector<1x16x8xf32>
      %62 = vector.shape_cast %61 : vector<1x16x8xf32> to vector<16x8xf32>
      %63 = tpu.concatenate %56, %58, %60, %62 in 1 : vector<16x8xf32>, vector<16x8xf32>, vector<16x8xf32>, vector<16x8xf32> -> vector<16x32xf32>
      %c0_42 = arith.constant 0 : index
      %c0_43 = arith.constant 0 : index
      %c0_44 = arith.constant 0 : index
      %64 = vector.load %arg7[%c0_42, %c0_43, %c0_44] : memref<1x16x32xf32, #tpu.memory_space<vmem>>, vector<1x16x32xf32>
      %65 = vector.shape_cast %64 : vector<1x16x32xf32> to vector<16x32xf32>
      %66 = vector.shape_cast %63 : vector<16x32xf32> to vector<1x16x32xf32>
      tpu.vector_store %arg7[%c0_42, %c0_43, %c0_44], %66 {strides = array<i32>} : memref<1x16x32xf32, #tpu.memory_space<vmem>>, vector<1x16x32xf32>,
    } else {
    }
    return
  }
  func.func @transform_0(%arg0: i32, %arg1: i32, %arg2: memref<1xi32, #tpu.memory_space<smem>>, %arg3: memref<1xi32, #tpu.memory_space<smem>>) -> (i32, i32, i32, i32) {
    %0 = arith.index_cast %arg1 : i32 to index
    %1 = memref.load %arg2[%0] : memref<1xi32, #tpu.memory_space<smem>>
    %c0_i32 = arith.constant 0 : i32
    %c0_i32_0 = arith.constant 0 : i32
    %c0_i32_1 = arith.constant 0 : i32
    return %arg0, %c0_i32, %1, %c0_i32_0 : i32, i32, i32, i32
  }
  func.func @transform_1(%arg0: i32, %arg1: i32, %arg2: memref<1xi32, #tpu.memory_space<smem>>, %arg3: memref<1xi32, #tpu.memory_space<smem>>) -> (i32, i32, i32, i32) {
    %0 = arith.index_cast %arg1 : i32 to index
    %1 = memref.load %arg3[%0] : memref<1xi32, #tpu.memory_space<smem>>
    %c0_i32 = arith.constant 0 : i32
    %c0_i32_0 = arith.constant 0 : i32
    %c0_i32_1 = arith.constant 0 : i32
    return %arg0, %c0_i32, %1, %c0_i32_0 : i32, i32, i32, i32
  }
  func.func @transform_2(%arg0: i32, %arg1: i32, %arg2: memref<1xi32, #tpu.memory_space<smem>>, %arg3: memref<1xi32, #tpu.memory_space<smem>>) -> (i32, i32, i32, i32) {
    %0 = arith.index_cast %arg1 : i32 to index
    %1 = memref.load %arg3[%0] : memref<1xi32, #tpu.memory_space<smem>>
    %c0_i32 = arith.constant 0 : i32
    %c0_i32_0 = arith.constant 0 : i32
    %c0_i32_1 = arith.constant 0 : i32
    return %arg0, %c0_i32, %1, %c0_i32_0 : i32, i32, i32, i32
  }
  func.func @transform_3(%arg0: i32, %arg1: i32, %arg2: memref<1xi32, #tpu.memory_space<smem>>, %arg3: memref<1xi32, #tpu.memory_space<smem>>) -> (i32, i32, i32) {
    %0 = arith.index_cast %arg1 : i32 to index
    %1 = memref.load %arg2[%0] : memref<1xi32, #tpu.memory_space<smem>>
    %c0_i32 = arith.constant 0 : i32
    %c0_i32_0 = arith.constant 0 : i32
    return %arg0, %1, %c0_i32 : i32, i32, i32
  }
}

</mosaic_0001>

<llo_original>
// kernel: tpu_custom_call.1
$region0: #{tpu_custom_call.1}
  #allocation0 [shape = 'u32[]', space=smem, size = 0x4, offset = 0x4, fixed_abs, tag = 'smem constant byte address 0x4 - core index']
  #allocation1 [shape = 'u32[144,128]{1,0:T(1,128)}', space=vmem, size = 0x12000, scoped, tag = 'internal scratch']
  #allocation2 [shape = 'f32[4,16,1]{2,1,0:T(8,128)}', space=vmem, size = 0x8000, scoped, tag = 'scratch operand']
  #allocation3 [shape = 'f32[4,16,1]{2,1,0:T(8,128)}', space=vmem, size = 0x8000, scoped, tag = 'scratch operand']
  #allocation4 [shape = 'f32[4,16,8]{2,1,0:T(8,128)}', space=vmem, size = 0x8000, scoped, tag = 'scratch operand']
  #allocation5 [shape = 's32[1]{0}', space=sflag, size = 0x4, scoped, tag = 'scoped memory for tpu_custom_call.1']
  #allocation6 [shape = 's32[1]{0:T(128)S(6)}', space=smem, size = 0x200, scoped, tag = 'prefetched SMEM operand 0']
  #allocation7 [shape = 's32[1]{0:T(128)S(6)}', space=smem, size = 0x200, scoped, tag = 'prefetched SMEM operand 1']
  %s0 = inlined_call_operand.<no memory space> [shape: s32[1], index: 0, kind: input, shape index: {}]
  %s1 = inlined_call_operand.<no memory space> [shape: s32[1], index: 1, kind: input, shape index: {}]
  %s2 = inlined_call_operand.vmem [shape: f32[2,4,16,8], index: 2, kind: input, shape index: {}]
  %s3 = inlined_call_operand.vmem [shape: f32[2,4,16,8], index: 3, kind: input, shape index: {}]
  %s4 = inlined_call_operand.vmem [shape: f32[2,4,16,8], index: 4, kind: input, shape index: {}]
  %s5 = inlined_call_operand.hbm [shape: f32[2,16,32], index: 5, kind: output, shape index: {}]
  %s6 = sld [smem:[#allocation0]]
  $region57: #{tpu_custom_call.1} parent=0
    _
  %s8 = ssub.s32 1, %s6
  %s9 = scalar_select 0, %s8, %s6
  %10 = sst [smem:[#allocation6]] %s0
  %11 = sst [smem:[#allocation7]] %s1
  $region1: #{tpu_custom_call.1} parent=0
    #allocation8 [shape = 'u8[16384]{0}', space=vmem, size = 0x4000, scoped, tag = 'output window, operand 0']
    #allocation9 [shape = 's32[2]{0}', space=sflag, size = 0x8, scoped, tag = 'scoped memory for tpu_custom_call.1']
    %12 = vsyncpa [#allocation9], 0
    %s13 = scalar_lea.sflag [#allocation9], 1
    %14 = vsyncpa %s13, 0
    loop: start=0, step=1, limit=4
    $region2: #{tpu_custom_call.1} parent=1 // loop_pre_header
      _
    $region3: #{tpu_custom_call.1} parent=1 // loop_header
      %s16 = sphi 0, %s20
      %p17 = scmp.ge.s32.totalorder %s16, 4
      %s23 = sphi 0, %s35
      %s24 = sphi 0, %s31
      %s25 = sphi 0, %s23
      %s26 = sphi 0, %s24
      %s27 = sphi 0, %s25
      %s28 = sphi 0, %s26
      %s42 = sphi 0, %s44
      %s45 = sphi 0, %s42
      %s46 = sphi 0, %s45
      %s62 = sphi 0, %s46
      %s72 = sphi 0, %s74
      %s75 = sphi 0, %s72
      %s76 = sphi 0, %s75
      %s92 = sphi 0, %s76
      %s102 = sphi 0, %s104
      %s105 = sphi 0, %s102
      %s106 = sphi 0, %s105
      %s122 = sphi 0, %s106
      %s132 = sphi 0, %s134
      %s135 = sphi 0, %s132
      %s136 = sphi 0, %s135
      %s152 = sphi 0, %s136
    $region4: #{tpu_custom_call.1} parent=1 // loop_header_branch
      %19 = sbr.rel (%p17) target = $region8
    $region5: #{tpu_custom_call.1} parent=1 // loop_body
      %s21 = ssub.s32 %s16, 1
      %s22 = ssub.s32 %s16, 2
      %s29 = sadd.s32 1, %s24
      %p30 = scmp.ge.s32.totalorder %s29, 1
      %s31 = scalar_select %p30, 0, %s29
      %s32 = sadd.s32 1, %s23
      %s33 = scalar_select %p30, %s32, %s23
      %p34 = scmp.ge.s32.totalorder %s33, 2
      %s35 = scalar_select %p34, 0, %s33
      %s36 = sld [smem:[#allocation6 + %s24]]
      %s37 = sld [smem:[#allocation6 + %s31]]
      %s38 = ssub.s32 %s23, %s35
      %s39 = ssub.s32 %s36, %s37
      %s40 = sor.u32 %s38, %s39
      %p41 = scmp.eq.s32.totalorder %s40, 0
      %s43 = sadd.s32 %s42, 1
      %s44 = scalar_select %p41, %s42, %s43
      %p47 = pneg %p41
      %p48 = scmp.eq.s32.totalorder %s16, 1
      %p49 = por %p47, %p48
      %p50 = scmp.ne.s32.totalorder %s42, %s45
      %p51 = scmp.eq.s32.totalorder %s16, 0
      %p52 = por %p50, %p51
      %p53 = scmp.ne.s32.totalorder %s42, %s45
      %p54 = scmp.eq.s32.totalorder %s21, 1
      %p55 = por %p53, %p54
      %p56 = scmp.ne.s32.totalorder %s45, %s46
      %p57 = scmp.eq.s32.totalorder %s21, 0
      %p58 = por %p56, %p57
      %p59 = scmp.ne.s32.totalorder %s45, %s46
      %p60 = scmp.eq.s32.totalorder %s22, 1
      %p61 = por %p59, %p60
      %p63 = scmp.ne.s32.totalorder %s46, %s62
      %p64 = scmp.eq.s32.totalorder %s22, 0
      %p65 = por %p63, %p64
      %s66 = sld [smem:[#allocation7 + %s24]]
      %s67 = sld [smem:[#allocation7 + %s31]]
      %s68 = ssub.s32 %s23, %s35
      %s69 = ssub.s32 %s66, %s67
      %s70 = sor.u32 %s68, %s69
      %p71 = scmp.eq.s32.totalorder %s70, 0
      %s73 = sadd.s32 %s72, 1
      %s74 = scalar_select %p71, %s72, %s73
      %p77 = pneg %p71
      %p78 = scmp.eq.s32.totalorder %s16, 1
      %p79 = por %p77, %p78
      %p80 = scmp.ne.s32.totalorder %s72, %s75
      %p81 = scmp.eq.s32.totalorder %s16, 0
      %p82 = por %p80, %p81
      %p83 = scmp.ne.s32.totalorder %s72, %s75
      %p84 = scmp.eq.s32.totalorder %s21, 1
      %p85 = por %p83, %p84
      %p86 = scmp.ne.s32.totalorder %s75, %s76
      %p87 = scmp.eq.s32.totalorder %s21, 0
      %p88 = por %p86, %p87
      %p89 = scmp.ne.s32.totalorder %s75, %s76
      %p90 = scmp.eq.s32.totalorder %s22, 1
      %p91 = por %p89, %p90
      %p93 = scmp.ne.s32.totalorder %s76, %s92
      %p94 = scmp.eq.s32.totalorder %s22, 0
      %p95 = por %p93, %p94
      %s96 = sld [smem:[#allocation7 + %s24]]
      %s97 = sld [smem:[#allocation7 + %s31]]
      %s98 = ssub.s32 %s23, %s35
      %s99 = ssub.s32 %s96, %s97
      %s100 = sor.u32 %s98, %s99
      %p101 = scmp.eq.s32.totalorder %s100, 0
      %s103 = sadd.s32 %s102, 1
      %s104 = scalar_select %p101, %s102, %s103
      %p107 = pneg %p101
      %p108 = scmp.eq.s32.totalorder %s16, 1
      %p109 = por %p107, %p108
      %p110 = scmp.ne.s32.totalorder %s102, %s105
      %p111 = scmp.eq.s32.totalorder %s16, 0
      %p112 = por %p110, %p111
      %p113 = scmp.ne.s32.totalorder %s102, %s105
      %p114 = scmp.eq.s32.totalorder %s21, 1
      %p115 = por %p113, %p114
      %p116 = scmp.ne.s32.totalorder %s105, %s106
      %p117 = scmp.eq.s32.totalorder %s21, 0
      %p118 = por %p116, %p117
      %p119 = scmp.ne.s32.totalorder %s105, %s106
      %p120 = scmp.eq.s32.totalorder %s22, 1
      %p121 = por %p119, %p120
      %p123 = scmp.ne.s32.totalorder %s106, %s122
      %p124 = scmp.eq.s32.totalorder %s22, 0
      %p125 = por %p123, %p124
      %s126 = sld [smem:[#allocation6 + %s24]]
      %s127 = sld [smem:[#allocation6 + %s31]]
      %s128 = ssub.s32 %s23, %s35
      %s129 = ssub.s32 %s126, %s127
      %s130 = sor.u32 %s128, %s129
      %p131 = scmp.eq.s32.totalorder %s130, 0
      %s133 = sadd.s32 %s132, 1
      %s134 = scalar_select %p131, %s132, %s133
      %p137 = pneg %p131
      %p138 = scmp.eq.s32.totalorder %s16, 1
      %p139 = por %p137, %p138
      %p140 = scmp.ne.s32.totalorder %s132, %s135
      %p141 = scmp.eq.s32.totalorder %s16, 0
      %p142 = por %p140, %p141
      %p143 = scmp.ne.s32.totalorder %s132, %s135
      %p144 = scmp.eq.s32.totalorder %s21, 1
      %p145 = por %p143, %p144
      %p146 = scmp.ne.s32.totalorder %s135, %s136
      %p147 = scmp.eq.s32.totalorder %s21, 0
      %p148 = por %p146, %p147
      %p149 = scmp.ne.s32.totalorder %s135, %s136
      %p150 = scmp.eq.s32.totalorder %s22, 1
      %p151 = por %p149, %p150
      %p153 = scmp.ne.s32.totalorder %s136, %s152
      %p154 = scmp.eq.s32.totalorder %s22, 0
      %p155 = por %p153, %p154
      %p156 = scmp.le.s32.totalorder 1, %s16
      %p157 = scmp.lt.s32.totalorder %s16, 3
      %p158 = pnand %p156, %p157
      %p159 = pneg %p158
      // Predicated region
      $region9: #{tpu_custom_call.1} parent=5 // pred_check
        _
      $region10: #{tpu_custom_call.1} parent=5 // pred_check_branch
        %161 = sbr.rel (%p158) target = $region12
      $region11: #{tpu_custom_call.1} parent=5 // pred_region
        %s162 = ssub.s32 %s16, 1
      $region12: #{tpu_custom_call.1} parent=5 // pred_fallthru
        _
      %p163 = scmp.lt.s32.totalorder %s16, 2
      // Predicated region
      $region13: #{tpu_custom_call.1} parent=5 // pred_check
        %p164 = pneg %p163
      $region14: #{tpu_custom_call.1} parent=5 // pred_check_branch
        %166 = sbr.rel (%p164) target = $region16
      $region15: #{tpu_custom_call.1} parent=5 // pred_region
        // Predicated region
        $region17: #{tpu_custom_call.1} parent=15 // pred_check
          %p167 = pneg %p52
        $region18: #{tpu_custom_call.1} parent=15 // pred_check_branch
          %169 = sbr.rel (%p167) target = $region20
        $region19: #{tpu_custom_call.1} parent=15 // pred_region
          %s170 = sld [smem:[#allocation6 + %s24]]
          %s171 = smul.u32 2, %s170
          %p172 = scmp.lt.s32.totalorder %s23, 1
          %s173 = scalar_select %p172, %s23, 1
          %p174 = scmp.lt.s32.totalorder %s171, 1
          %s175 = scalar_select %p174, %s171, 1
          %s176 = smul.addr %s173, 8
          %s177 = sadd.s32 %s175, %s176
          %s178 = smul.addr %s177, 8
          %s179 = scalar_lea.vmem %s2, %s178
          %s180 = sld [smem:[#allocation6 + %s24]]
          %s181 = smul.u32 2, %s180
        $region20: #{tpu_custom_call.1} parent=15 // pred_fallthru
          _
        // Predicated region
        $region21: #{tpu_custom_call.1} parent=15 // pred_check
          %p182 = pneg %p82
        $region22: #{tpu_custom_call.1} parent=15 // pred_check_branch
          %184 = sbr.rel (%p182) target = $region24
        $region23: #{tpu_custom_call.1} parent=15 // pred_region
          %s185 = sld [smem:[#allocation7 + %s24]]
          %s186 = smul.u32 2, %s185
          %p187 = scmp.lt.s32.totalorder %s23, 1
          %s188 = scalar_select %p187, %s23, 1
          %p189 = scmp.lt.s32.totalorder %s186, 1
          %s190 = scalar_select %p189, %s186, 1
          %s191 = smul.addr %s188, 8
          %s192 = sadd.s32 %s190, %s191
          %s193 = smul.addr %s192, 8
          %s194 = scalar_lea.vmem %s3, %s193
          %s195 = sld [smem:[#allocation7 + %s24]]
          %s196 = smul.u32 2, %s195
        $region24: #{tpu_custom_call.1} parent=15 // pred_fallthru
          _
        // Predicated region
        $region25: #{tpu_custom_call.1} parent=15 // pred_check
          %p197 = pneg %p112
        $region26: #{tpu_custom_call.1} parent=15 // pred_check_branch
          %199 = sbr.rel (%p197) target = $region28
        $region27: #{tpu_custom_call.1} parent=15 // pred_region
          %s200 = sld [smem:[#allocation7 + %s24]]
          %s201 = smul.u32 2, %s200
          %p202 = scmp.lt.s32.totalorder %s23, 1
          %s203 = scalar_select %p202, %s23, 1
          %p204 = scmp.lt.s32.totalorder %s201, 1
          %s205 = scalar_select %p204, %s201, 1
          %s206 = smul.addr %s203, 8
          %s207 = sadd.s32 %s205, %s206
          %s208 = smul.addr %s207, 8
          %s209 = scalar_lea.vmem %s4, %s208
          %s210 = sld [smem:[#allocation7 + %s24]]
          %s211 = smul.u32 2, %s210
        $region28: #{tpu_custom_call.1} parent=15 // pred_fallthru
          _
      $region16: #{tpu_custom_call.1} parent=5 // pred_fallthru
        _
      %p212 = scmp.le.s32.totalorder 1, %s16
      %p213 = scmp.lt.s32.totalorder %s16, 3
      %p214 = pnand %p212, %p213
      %p215 = pneg %p214
      // Predicated region
      $region29: #{tpu_custom_call.1} parent=5 // pred_check
        _
      $region30: #{tpu_custom_call.1} parent=5 // pred_check_branch
        %217 = sbr.rel (%p214) target = $region32
      $region31: #{tpu_custom_call.1} parent=5 // pred_region
        %s218 = ssub.s32 %s16, 1
        %s219 = sld [smem:[#allocation6 + %s26]]
        %s220 = smul.u32 2, %s219
        %p221 = scmp.lt.s32.totalorder %s25, 1
        %s222 = scalar_select %p221, %s25, 1
        %p223 = scmp.lt.s32.totalorder %s220, 1
        %s224 = scalar_select %p223, %s220, 1
        %s225 = smul.addr %s222, 8
        %s226 = sadd.s32 %s224, %s225
        %s227 = smul.addr %s226, 8
        %s228 = scalar_lea.vmem %s2, %s227
        %p229 = pneg %p58
        %p230 = pneg %p55
        %s231 = sld [smem:[#allocation7 + %s26]]
        %s232 = smul.u32 2, %s231
        %p233 = scmp.lt.s32.totalorder %s25, 1
        %s234 = scalar_select %p233, %s25, 1
        %p235 = scmp.lt.s32.totalorder %s232, 1
        %s236 = scalar_select %p235, %s232, 1
        %s237 = smul.addr %s234, 8
        %s238 = sadd.s32 %s236, %s237
        %s239 = smul.addr %s238, 8
        %s240 = scalar_lea.vmem %s3, %s239
        %p241 = pneg %p88
        %p242 = pneg %p85
        %s243 = sld [smem:[#allocation7 + %s26]]
        %s244 = smul.u32 2, %s243
        %p245 = scmp.lt.s32.totalorder %s25, 1
        %s246 = scalar_select %p245, %s25, 1
        %p247 = scmp.lt.s32.totalorder %s244, 1
        %s248 = scalar_select %p247, %s244, 1
        %s249 = smul.addr %s246, 8
        %s250 = sadd.s32 %s248, %s249
        %s251 = smul.addr %s250, 8
        %s252 = scalar_lea.vmem %s4, %s251
        %p253 = pneg %p118
        %p254 = pneg %p115
        %p255 = pneg %p148
        %p256 = pneg %p145
        %s257 = sand.u32 %s135, 1
        %s258 = scalar_lea.sflag [#allocation9], %s257
        %s259 = sand.u32 %s135, 1
        %s260 = smul.addr %s259, 16
        %s261 = scalar_lea.vmem [#allocation8], %s260
        %s262 = sld [smem:[#allocation6 + %s26]]
        %s263 = smul.u32 2, %s262
        %p264 = scmp.lt.s32.totalorder %s25, 1
        %s265 = scalar_select %p264, %s25, 1
        %p266 = scmp.lt.s32.totalorder %s263, 1
        %s267 = scalar_select %p266, %s263, 1
        %s268 = smul.addr %s265, 8
        %s269 = sadd.s32 %s267, %s268
        %s270 = smul.addr %s269, 8
        %s271 = scalar_lea.vmem %s2, %s270
        %s272 = sld [smem:[#allocation6 + %s26]]
        %s273 = smul.u32 2, %s272
        %s274 = sld [smem:[#allocation7 + %s26]]
        %s275 = smul.u32 2, %s274
        %p276 = scmp.lt.s32.totalorder %s25, 1
        %s277 = scalar_select %p276, %s25, 1
        %p278 = scmp.lt.s32.totalorder %s275, 1
        %s279 = scalar_select %p278, %s275, 1
        %s280 = smul.addr %s277, 8
        %s281 = sadd.s32 %s279, %s280
        %s282 = smul.addr %s281, 8
        %s283 = scalar_lea.vmem %s3, %s282
        %s284 = sld [smem:[#allocation7 + %s26]]
        %s285 = smul.u32 2, %s284
        %s286 = sld [smem:[#allocation7 + %s26]]
        %s287 = smul.u32 2, %s286
        %p288 = scmp.lt.s32.totalorder %s25, 1
        %s289 = scalar_select %p288, %s25, 1
        %p290 = scmp.lt.s32.totalorder %s287, 1
        %s291 = scalar_select %p290, %s287, 1
        %s292 = smul.addr %s289, 8
        %s293 = sadd.s32 %s291, %s292
        %s294 = smul.addr %s293, 8
        %s295 = scalar_lea.vmem %s4, %s294
        %s296 = sld [smem:[#allocation7 + %s26]]
        %s297 = smul.u32 2, %s296
        %s298 = sld [smem:[#allocation6 + %s26]]
        %s299 = smul.u32 2, %s298
        %s300 = sld [smem:[#allocation6 + %s26]]
        %s301 = sld [smem:[#allocation7 + %s26]]
        %p302 = scmp.eq.s32.totalorder %s301, 0
        // Predicated region
        $region33: #{tpu_custom_call.1} parent=31 // pred_check
          %p303 = pneg %p302
        $region34: #{tpu_custom_call.1} parent=31 // pred_check_branch
          %305 = sbr.rel (%p303) target = $region36
        $region35: #{tpu_custom_call.1} parent=31 // pred_region
          %vm306 = vcmask 7168
          %307 = vst.msk [vmem:[#allocation2] sm:$0xff] %vm306, -inf
          %308 = vst.msk [vmem:[#allocation2 + $0x8] sm:$0xff] %vm306, -inf
          %309 = vst.msk [vmem:[#allocation2 + $0x10] sm:$0xff] %vm306, -inf
          %310 = vst.msk [vmem:[#allocation2 + $0x18] sm:$0xff] %vm306, -inf
          %311 = vst.msk [vmem:[#allocation2 + $0x20] sm:$0xff] %vm306, -inf
          %312 = vst.msk [vmem:[#allocation2 + $0x28] sm:$0xff] %vm306, -inf
          %313 = vst.msk [vmem:[#allocation2 + $0x30] sm:$0xff] %vm306, -inf
          %314 = vst.msk [vmem:[#allocation2 + $0x38] sm:$0xff] %vm306, -inf
          %315 = vst.msk [vmem:[#allocation3] sm:$0xff] %vm306, 0.0
          %316 = vst.msk [vmem:[#allocation3 + $0x8] sm:$0xff] %vm306, 0.0
          %317 = vst.msk [vmem:[#allocation3 + $0x10] sm:$0xff] %vm306, 0.0
          %318 = vst.msk [vmem:[#allocation3 + $0x18] sm:$0xff] %vm306, 0.0
          %319 = vst.msk [vmem:[#allocation3 + $0x20] sm:$0xff] %vm306, 0.0
          %320 = vst.msk [vmem:[#allocation3 + $0x28] sm:$0xff] %vm306, 0.0
          %321 = vst.msk [vmem:[#allocation3 + $0x30] sm:$0xff] %vm306, 0.0
          %322 = vst.msk [vmem:[#allocation3 + $0x38] sm:$0xff] %vm306, 0.0
          %vm323 = vcmask 64512
          %324 = vst.msk [vmem:[#allocation4] sm:$0xff] %vm323, 0.0
          %325 = vst.msk [vmem:[#allocation4 + $0x8] sm:$0xff] %vm323, 0.0
          %326 = vst.msk [vmem:[#allocation4 + $0x10] sm:$0xff] %vm323, 0.0
          %327 = vst.msk [vmem:[#allocation4 + $0x18] sm:$0xff] %vm323, 0.0
          %328 = vst.msk [vmem:[#allocation4 + $0x20] sm:$0xff] %vm323, 0.0
          %329 = vst.msk [vmem:[#allocation4 + $0x28] sm:$0xff] %vm323, 0.0
          %330 = vst.msk [vmem:[#allocation4 + $0x30] sm:$0xff] %vm323, 0.0
          %331 = vst.msk [vmem:[#allocation4 + $0x38] sm:$0xff] %vm323, 0.0
        $region36: #{tpu_custom_call.1} parent=31 // pred_fallthru
          _
        %p332 = scmp.lt.s32.totalorder %s301, %s300
        // Predicated region
        $region37: #{tpu_custom_call.1} parent=31 // pred_check
          %p333 = pneg %p332
        $region38: #{tpu_custom_call.1} parent=31 // pred_check_branch
          %335 = sbr.rel (%p333) target = $region40
        $region39: #{tpu_custom_call.1} parent=31 // pred_region
          %v336 = vld [vmem:[%s271] sm:$0xff]
          %v337 = vld [vmem:[%s271 + $0x8] sm:$0xff]
          %v338 = vld [vmem:[%s271 + $0x10] sm:$0xff]
          %v339 = vld [vmem:[%s271 + $0x18] sm:$0xff]
          %v340 = vld [vmem:[%s271 + $0x20] sm:$0xff]
          %v341 = vld [vmem:[%s271 + $0x28] sm:$0xff]
          %v342 = vld [vmem:[%s271 + $0x30] sm:$0xff]
          %v343 = vld [vmem:[%s271 + $0x38] sm:$0xff]
          %v344 = vld [vmem:[%s283] sm:$0xff]
          %v345 = vld [vmem:[%s283 + $0x8] sm:$0xff]
          %v346 = vld [vmem:[%s283 + $0x10] sm:$0xff]
          %v347 = vld [vmem:[%s283 + $0x18] sm:$0xff]
          %v348 = vld [vmem:[%s283 + $0x20] sm:$0xff]
          %v349 = vld [vmem:[%s283 + $0x28] sm:$0xff]
          %v350 = vld [vmem:[%s283 + $0x30] sm:$0xff]
          %v351 = vld [vmem:[%s283 + $0x38] sm:$0xff]
          %v352 = vld [vmem:[%s295] sm:$0xff]
          %v353 = vld [vmem:[%s295 + $0x8] sm:$0xff]
          %v354 = vld [vmem:[%s295 + $0x10] sm:$0xff]
          %v355 = vld [vmem:[%s295 + $0x18] sm:$0xff]
          %v356 = vld [vmem:[%s295 + $0x20] sm:$0xff]
          %v357 = vld [vmem:[%s295 + $0x28] sm:$0xff]
          %v358 = vld [vmem:[%s295 + $0x30] sm:$0xff]
          %v359 = vld [vmem:[%s295 + $0x38] sm:$0xff]
          %vm360 = vcmask 64512
          %v362 = vsel %vm360, %v336, 0
          %v365 = vsel %vm360, %v337, 0
          %v368 = vsel %vm360, %v344, 0
          %v371 = vsel %vm360, %v345, 0
          %373 = vmatprep.subr.mxu0 0.0
          %374 = vmatpush1.xpose.msra.mxu0 0.0
          %375 = vmatprep.subr.mxu0 0.0
          %376 = vmatpush1.xpose.msra.mxu0 0.0
          %377 = vmatprep.subr.mxu0 0.0
          %378 = vmatpush1.xpose.msra.mxu0 0.0
          %379 = vmatprep.subr.mxu0 0.0
          %380 = vmatpush1.xpose.msra.mxu0 0.0
          %381 = vmatprep.subr.mxu0 0.0
          %382 = vmatpush1.xpose.msra.mxu0 0.0
          %383 = vmatprep.subr.mxu0 0.0
          %384 = vmatpush1.xpose.msra.mxu0 0.0
          %385 = vmatprep.subr.mxu0 0.0
          %386 = vmatpush1.xpose.msra.mxu0 0.0
          %387 = vmatprep.subr.mxu0 0.0
          %388 = vmatpush1.xpose.msra.mxu0 0.0
          %389 = vmatprep.subr.mxu0 0.0
          %390 = vmatpush1.xpose.msra.mxu0 0.0
          %391 = vmatprep.subr.mxu0 0.0
          %392 = vmatpush1.xpose.msra.mxu0 0.0
          %393 = vmatprep.subr.mxu0 0.0
          %394 = vmatpush1.xpose.msra.mxu0 0.0
          %395 = vmatprep.subr.mxu0 0.0
          %396 = vmatpush1.xpose.msra.mxu0 0.0
          %397 = vmatprep.subr.mxu0 0.0
          %398 = vmatpush1.xpose.msra.mxu0 0.0
          %399 = vmatprep.subr.mxu0 0.0
          %400 = vmatpush1.xpose.msra.mxu0 0.0
          %401 = vmatprep.subr.mxu0 0.0
          %402 = vmatpush1.xpose.msra.mxu0 %v371
          %403 = vmatprep.subr.mxu0 0.0
          %404 = vmatpush1.xpose.msra.mxu0 %v368
          %405 = vmatprep.subr.mxu0 0.0
          %406 = vmatpush2.xpose.msra.mxu0 0.0
          %407 = vmatprep.subr.mxu0 0.0
          %408 = vmatpush2.xpose.msra.mxu0 0.0
          %409 = vmatprep.subr.mxu0 0.0
          %410 = vmatpush2.xpose.msra.mxu0 0.0
          %411 = vmatprep.subr.mxu0 0.0
          %412 = vmatpush2.xpose.msra.mxu0 0.0
          %413 = vmatprep.subr.mxu0 0.0
          %414 = vmatpush2.xpose.msra.mxu0 0.0
          %415 = vmatprep.subr.mxu0 0.0
          %416 = vmatpush2.xpose.msra.mxu0 0.0
          %417 = vmatprep.subr.mxu0 0.0
          %418 = vmatpush2.xpose.msra.mxu0 0.0
          %419 = vmatprep.subr.mxu0 0.0
          %420 = vmatpush2.xpose.msra.mxu0 0.0
          %421 = vmatprep.subr.mxu0 0.0
          %422 = vmatpush2.xpose.msra.mxu0 0.0
          %423 = vmatprep.subr.mxu0 0.0
          %424 = vmatpush2.xpose.msra.mxu0 0.0
          %425 = vmatprep.subr.mxu0 0.0
          %426 = vmatpush2.xpose.msra.mxu0 0.0
          %427 = vmatprep.subr.mxu0 0.0
          %428 = vmatpush2.xpose.msra.mxu0 0.0
          %429 = vmatprep.subr.mxu0 0.0
          %430 = vmatpush2.xpose.msra.mxu0 0.0
          %431 = vmatprep.subr.mxu0 0.0
          %432 = vmatpush2.xpose.msra.mxu0 0.0
          %433 = vmatprep.subr.mxu0 0.0
          %434 = vmatpush2.xpose.msra.mxu0 0.0
          %435 = vmatprep.subr.mxu0 0.0
          %436 = vmatpush2.xpose.msra.mxu0 0.0
          %437 = vmatprep.mubr.f32.mxu0 0.0
          %438 = vmatmul.mubr.f32.gmra.mxu0 %v362
          %v439 = vpop.f32.mrf.mxu0
          %v440 = vadd.f32 0.0, %v439
          %v441 = vpop.f32.mrf.mxu0
          %442 = vmatprep.mubr.f32.mxu0 0.0
          %443 = vmatmul.mubr.f32.gmra.mxu0 %v365
          %v444 = vpop.f32.mrf.mxu0
          %v445 = vadd.f32 0.0, %v444
          %v446 = vpop.f32.mrf.mxu0
          %447 = vdwg.mxu0
          %v449 = vsel %vm360, %v338, 0
          %v452 = vsel %vm360, %v339, 0
          %v455 = vsel %vm360, %v346, 0
          %v458 = vsel %vm360, %v347, 0
          %460 = vmatprep.subr.mxu0 0.0
          %461 = vmatpush1.xpose.msra.mxu0 0.0
          %462 = vmatprep.subr.mxu0 0.0
          %463 = vmatpush1.xpose.msra.mxu0 0.0
          %464 = vmatprep.subr.mxu0 0.0
          %465 = vmatpush1.xpose.msra.mxu0 0.0
          %466 = vmatprep.subr.mxu0 0.0
          %467 = vmatpush1.xpose.msra.mxu0 0.0
          %468 = vmatprep.subr.mxu0 0.0
          %469 = vmatpush1.xpose.msra.mxu0 0.0
          %470 = vmatprep.subr.mxu0 0.0
          %471 = vmatpush1.xpose.msra.mxu0 0.0
          %472 = vmatprep.subr.mxu0 0.0
          %473 = vmatpush1.xpose.msra.mxu0 0.0
          %474 = vmatprep.subr.mxu0 0.0
          %475 = vmatpush1.xpose.msra.mxu0 0.0
          %476 = vmatprep.subr.mxu0 0.0
          %477 = vmatpush1.xpose.msra.mxu0 0.0
          %478 = vmatprep.subr.mxu0 0.0
          %479 = vmatpush1.xpose.msra.mxu0 0.0
          %480 = vmatprep.subr.mxu0 0.0
          %481 = vmatpush1.xpose.msra.mxu0 0.0
          %482 = vmatprep.subr.mxu0 0.0
          %483 = vmatpush1.xpose.msra.mxu0 0.0
          %484 = vmatprep.subr.mxu0 0.0
          %485 = vmatpush1.xpose.msra.mxu0 0.0
          %486 = vmatprep.subr.mxu0 0.0
          %487 = vmatpush1.xpose.msra.mxu0 0.0
          %488 = vmatprep.subr.mxu0 0.0
          %489 = vmatpush1.xpose.msra.mxu0 %v458
          %490 = vmatprep.subr.mxu0 0.0
          %491 = vmatpush1.xpose.msra.mxu0 %v455
          %492 = vmatprep.subr.mxu0 0.0
          %493 = vmatpush2.xpose.msra.mxu0 0.0
          %494 = vmatprep.subr.mxu0 0.0
          %495 = vmatpush2.xpose.msra.mxu0 0.0
          %496 = vmatprep.subr.mxu0 0.0
          %497 = vmatpush2.xpose.msra.mxu0 0.0
          %498 = vmatprep.subr.mxu0 0.0
          %499 = vmatpush2.xpose.msra.mxu0 0.0
          %500 = vmatprep.subr.mxu0 0.0
          %501 = vmatpush2.xpose.msra.mxu0 0.0
          %502 = vmatprep.subr.mxu0 0.0
          %503 = vmatpush2.xpose.msra.mxu0 0.0
          %504 = vmatprep.subr.mxu0 0.0
          %505 = vmatpush2.xpose.msra.mxu0 0.0
          %506 = vmatprep.subr.mxu0 0.0
          %507 = vmatpush2.xpose.msra.mxu0 0.0
          %508 = vmatprep.subr.mxu0 0.0
          %509 = vmatpush2.xpose.msra.mxu0 0.0
          %510 = vmatprep.subr.mxu0 0.0
          %511 = vmatpush2.xpose.msra.mxu0 0.0
          %512 = vmatprep.subr.mxu0 0.0
          %513 = vmatpush2.xpose.msra.mxu0 0.0
          %514 = vmatprep.subr.mxu0 0.0
          %515 = vmatpush2.xpose.msra.mxu0 0.0
          %516 = vmatprep.subr.mxu0 0.0
          %517 = vmatpush2.xpose.msra.mxu0 0.0
          %518 = vmatprep.subr.mxu0 0.0
          %519 = vmatpush2.xpose.msra.mxu0 0.0
          %520 = vmatprep.subr.mxu0 0.0
          %521 = vmatpush2.xpose.msra.mxu0 0.0
          %522 = vmatprep.subr.mxu0 0.0
          %523 = vmatpush2.xpose.msra.mxu0 0.0
          %524 = vmatprep.mubr.f32.mxu0 0.0
          %525 = vmatmul.mubr.f32.gmra.mxu0 %v449
          %v526 = vpop.f32.mrf.mxu0
          %v527 = vadd.f32 0.0, %v526
          %v528 = vpop.f32.mrf.mxu0
          %529 = vmatprep.mubr.f32.mxu0 0.0
          %530 = vmatmul.mubr.f32.gmra.mxu0 %v452
          %v531 = vpop.f32.mrf.mxu0
          %v532 = vadd.f32 0.0, %v531
          %v533 = vpop.f32.mrf.mxu0
          %534 = vdwg.mxu0
          %v536 = vsel %vm360, %v340, 0
          %v539 = vsel %vm360, %v341, 0
          %v542 = vsel %vm360, %v348, 0
          %v545 = vsel %vm360, %v349, 0
          %547 = vmatprep.subr.mxu0 0.0
          %548 = vmatpush1.xpose.msra.mxu0 0.0
          %549 = vmatprep.subr.mxu0 0.0
          %550 = vmatpush1.xpose.msra.mxu0 0.0
          %551 = vmatprep.subr.mxu0 0.0
          %552 = vmatpush1.xpose.msra.mxu0 0.0
          %553 = vmatprep.subr.mxu0 0.0
          %554 = vmatpush1.xpose.msra.mxu0 0.0
          %555 = vmatprep.subr.mxu0 0.0
          %556 = vmatpush1.xpose.msra.mxu0 0.0
          %557 = vmatprep.subr.mxu0 0.0
          %558 = vmatpush1.xpose.msra.mxu0 0.0
          %559 = vmatprep.subr.mxu0 0.0
          %560 = vmatpush1.xpose.msra.mxu0 0.0
          %561 = vmatprep.subr.mxu0 0.0
          %562 = vmatpush1.xpose.msra.mxu0 0.0
          %563 = vmatprep.subr.mxu0 0.0
          %564 = vmatpush1.xpose.msra.mxu0 0.0
          %565 = vmatprep.subr.mxu0 0.0
          %566 = vmatpush1.xpose.msra.mxu0 0.0
          %567 = vmatprep.subr.mxu0 0.0
          %568 = vmatpush1.xpose.msra.mxu0 0.0
          %569 = vmatprep.subr.mxu0 0.0
          %570 = vmatpush1.xpose.msra.mxu0 0.0
          %571 = vmatprep.subr.mxu0 0.0
          %572 = vmatpush1.xpose.msra.mxu0 0.0
          %573 = vmatprep.subr.mxu0 0.0
          %574 = vmatpush1.xpose.msra.mxu0 0.0
          %575 = vmatprep.subr.mxu0 0.0
          %576 = vmatpush1.xpose.msra.mxu0 %v545
          %577 = vmatprep.subr.mxu0 0.0
          %578 = vmatpush1.xpose.msra.mxu0 %v542
          %579 = vmatprep.subr.mxu0 0.0
          %580 = vmatpush2.xpose.msra.mxu0 0.0
          %581 = vmatprep.subr.mxu0 0.0
          %582 = vmatpush2.xpose.msra.mxu0 0.0
          %583 = vmatprep.subr.mxu0 0.0
          %584 = vmatpush2.xpose.msra.mxu0 0.0
          %585 = vmatprep.subr.mxu0 0.0
          %586 = vmatpush2.xpose.msra.mxu0 0.0
          %587 = vmatprep.subr.mxu0 0.0
          %588 = vmatpush2.xpose.msra.mxu0 0.0
          %589 = vmatprep.subr.mxu0 0.0
          %590 = vmatpush2.xpose.msra.mxu0 0.0
          %591 = vmatprep.subr.mxu0 0.0
          %592 = vmatpush2.xpose.msra.mxu0 0.0
          %593 = vmatprep.subr.mxu0 0.0
          %594 = vmatpush2.xpose.msra.mxu0 0.0
          %595 = vmatprep.subr.mxu0 0.0
          %596 = vmatpush2.xpose.msra.mxu0 0.0
          %597 = vmatprep.subr.mxu0 0.0
          %598 = vmatpush2.xpose.msra.mxu0 0.0
          %599 = vmatprep.subr.mxu0 0.0
          %600 = vmatpush2.xpose.msra.mxu0 0.0
          %601 = vmatprep.subr.mxu0 0.0
          %602 = vmatpush2.xpose.msra.mxu0 0.0
          %603 = vmatprep.subr.mxu0 0.0
          %604 = vmatpush2.xpose.msra.mxu0 0.0
          %605 = vmatprep.subr.mxu0 0.0
          %606 = vmatpush2.xpose.msra.mxu0 0.0
          %607 = vmatprep.subr.mxu0 0.0
          %608 = vmatpush2.xpose.msra.mxu0 0.0
          %609 = vmatprep.subr.mxu0 0.0
          %610 = vmatpush2.xpose.msra.mxu0 0.0
          %611 = vmatprep.mubr.f32.mxu0 0.0
          %612 = vmatmul.mubr.f32.gmra.mxu0 %v536
          %v613 = vpop.f32.mrf.mxu0
          %v614 = vadd.f32 0.0, %v613
          %v615 = vpop.f32.mrf.mxu0
          %616 = vmatprep.mubr.f32.mxu0 0.0
          %617 = vmatmul.mubr.f32.gmra.mxu0 %v539
          %v618 = vpop.f32.mrf.mxu0
          %v619 = vadd.f32 0.0, %v618
          %v620 = vpop.f32.mrf.mxu0
          %621 = vdwg.mxu0
          %v623 = vsel %vm360, %v342, 0
          %v626 = vsel %vm360, %v343, 0
          %v629 = vsel %vm360, %v350, 0
          %v632 = vsel %vm360, %v351, 0
          %634 = vmatprep.subr.mxu0 0.0
          %635 = vmatpush1.xpose.msra.mxu0 0.0
          %636 = vmatprep.subr.mxu0 0.0
          %637 = vmatpush1.xpose.msra.mxu0 0.0
          %638 = vmatprep.subr.mxu0 0.0
          %639 = vmatpush1.xpose.msra.mxu0 0.0
          %640 = vmatprep.subr.mxu0 0.0
          %641 = vmatpush1.xpose.msra.mxu0 0.0
          %642 = vmatprep.subr.mxu0 0.0
          %643 = vmatpush1.xpose.msra.mxu0 0.0
          %644 = vmatprep.subr.mxu0 0.0
          %645 = vmatpush1.xpose.msra.mxu0 0.0
          %646 = vmatprep.subr.mxu0 0.0
          %647 = vmatpush1.xpose.msra.mxu0 0.0
          %648 = vmatprep.subr.mxu0 0.0
          %649 = vmatpush1.xpose.msra.mxu0 0.0
          %650 = vmatprep.subr.mxu0 0.0
          %651 = vmatpush1.xpose.msra.mxu0 0.0
          %652 = vmatprep.subr.mxu0 0.0
          %653 = vmatpush1.xpose.msra.mxu0 0.0
          %654 = vmatprep.subr.mxu0 0.0
          %655 = vmatpush1.xpose.msra.mxu0 0.0
          %656 = vmatprep.subr.mxu0 0.0
          %657 = vmatpush1.xpose.msra.mxu0 0.0
          %658 = vmatprep.subr.mxu0 0.0
          %659 = vmatpush1.xpose.msra.mxu0 0.0
          %660 = vmatprep.subr.mxu0 0.0
          %661 = vmatpush1.xpose.msra.mxu0 0.0
          %662 = vmatprep.subr.mxu0 0.0
          %663 = vmatpush1.xpose.msra.mxu0 %v632
          %664 = vmatprep.subr.mxu0 0.0
          %665 = vmatpush1.xpose.msra.mxu0 %v629
          %666 = vmatprep.subr.mxu0 0.0
          %667 = vmatpush2.xpose.msra.mxu0 0.0
          %668 = vmatprep.subr.mxu0 0.0
          %669 = vmatpush2.xpose.msra.mxu0 0.0
          %670 = vmatprep.subr.mxu0 0.0
          %671 = vmatpush2.xpose.msra.mxu0 0.0
          %672 = vmatprep.subr.mxu0 0.0
          %673 = vmatpush2.xpose.msra.mxu0 0.0
          %674 = vmatprep.subr.mxu0 0.0
          %675 = vmatpush2.xpose.msra.mxu0 0.0
          %676 = vmatprep.subr.mxu0 0.0
          %677 = vmatpush2.xpose.msra.mxu0 0.0
          %678 = vmatprep.subr.mxu0 0.0
          %679 = vmatpush2.xpose.msra.mxu0 0.0
          %680 = vmatprep.subr.mxu0 0.0
          %681 = vmatpush2.xpose.msra.mxu0 0.0
          %682 = vmatprep.subr.mxu0 0.0
          %683 = vmatpush2.xpose.msra.mxu0 0.0
          %684 = vmatprep.subr.mxu0 0.0
          %685 = vmatpush2.xpose.msra.mxu0 0.0
          %686 = vmatprep.subr.mxu0 0.0
          %687 = vmatpush2.xpose.msra.mxu0 0.0
          %688 = vmatprep.subr.mxu0 0.0
          %689 = vmatpush2.xpose.msra.mxu0 0.0
          %690 = vmatprep.subr.mxu0 0.0
          %691 = vmatpush2.xpose.msra.mxu0 0.0
          %692 = vmatprep.subr.mxu0 0.0
          %693 = vmatpush2.xpose.msra.mxu0 0.0
          %694 = vmatprep.subr.mxu0 0.0
          %695 = vmatpush2.xpose.msra.mxu0 0.0
          %696 = vmatprep.subr.mxu0 0.0
          %697 = vmatpush2.xpose.msra.mxu0 0.0
          %698 = vmatprep.mubr.f32.mxu0 0.0
          %699 = vmatmul.mubr.f32.gmra.mxu0 %v623
          %v700 = vpop.f32.mrf.mxu0
          %v701 = vadd.f32 0.0, %v700
          %v702 = vpop.f32.mrf.mxu0
          %703 = vmatprep.mubr.f32.mxu0 0.0
          %704 = vmatmul.mubr.f32.gmra.mxu0 %v626
          %v705 = vpop.f32.mrf.mxu0
          %v706 = vadd.f32 0.0, %v705
          %v707 = vpop.f32.mrf.mxu0
          %708 = vdwg.mxu0
          %v709 = vld [vmem:[#allocation2] sm:$0xff]
          %v710 = vld [vmem:[#allocation2 + $0x8] sm:$0xff]
          %v711 = vld [vmem:[#allocation2 + $0x10] sm:$0xff]
          %v712 = vld [vmem:[#allocation2 + $0x18] sm:$0xff]
          %v713 = vld [vmem:[#allocation2 + $0x20] sm:$0xff]
          %v714 = vld [vmem:[#allocation2 + $0x28] sm:$0xff]
          %v715 = vld [vmem:[#allocation2 + $0x30] sm:$0xff]
          %v716 = vld [vmem:[#allocation2 + $0x38] sm:$0xff]
          %vm717 = vcmask 130048
          %v718 = vsel %vm717, %v440, -inf
          %719 = vmax.xlane.f32.xlu0 %v718
          %v720 = vpop.xlane.xlu0 %719
          %v721 = vsel %vm717, %v445, -inf
          %722 = vmax.xlane.f32.xlu0 %v721
          %v723 = vpop.xlane.xlu0 %722
          %v724 = vsel %vm717, %v527, -inf
          %725 = vmax.xlane.f32.xlu0 %v724
          %v726 = vpop.xlane.xlu0 %725
          %v727 = vsel %vm717, %v532, -inf
          %728 = vmax.xlane.f32.xlu0 %v727
          %v729 = vpop.xlane.xlu0 %728
          %v730 = vsel %vm717, %v614, -inf
          %731 = vmax.xlane.f32.xlu0 %v730
          %v732 = vpop.xlane.xlu0 %731
          %v733 = vsel %vm717, %v619, -inf
          %734 = vmax.xlane.f32.xlu0 %v733
          %v735 = vpop.xlane.xlu0 %734
          %v736 = vsel %vm717, %v701, -inf
          %737 = vmax.xlane.f32.xlu0 %v736
          %v738 = vpop.xlane.xlu0 %737
          %v739 = vsel %vm717, %v706, -inf
          %740 = vmax.xlane.f32.xlu0 %v739
          %v741 = vpop.xlane.xlu0 %740
          %v742 = vmax.f32 %v709, %v720
          %v743 = vmax.f32 %v710, %v723
          %v744 = vmax.f32 %v711, %v726
          %v745 = vmax.f32 %v712, %v729
          %v746 = vmax.f32 %v713, %v732
          %v747 = vmax.f32 %v714, %v735
          %v748 = vmax.f32 %v715, %v738
          %v749 = vmax.f32 %v716, %v741
          %v750 = vsub.f32 %v709, %v742
          %v751 = vsub.f32 %v710, %v743
          %v752 = vsub.f32 %v711, %v744
          %v753 = vsub.f32 %v712, %v745
          %v754 = vsub.f32 %v713, %v746
          %v755 = vsub.f32 %v714, %v747
          %v756 = vsub.f32 %v715, %v748
          %v757 = vsub.f32 %v716, %v749
          %v758 = vmul.f32 %v750, 1.442695
          %v759 = vpow.pop %v758
          %v760 = vmul.f32 %v751, 1.442695
          %v761 = vpow.pop %v760
          %v762 = vmul.f32 %v752, 1.442695
          %v763 = vpow.pop %v762
          %v764 = vmul.f32 %v753, 1.442695
          %v765 = vpow.pop %v764
          %v766 = vmul.f32 %v754, 1.442695
          %v767 = vpow.pop %v766
          %v768 = vmul.f32 %v755, 1.442695
          %v769 = vpow.pop %v768
          %v770 = vmul.f32 %v756, 1.442695
          %v771 = vpow.pop %v770
          %v772 = vmul.f32 %v757, 1.442695
          %v773 = vpow.pop %v772
          %775 = vset.pattern.permute.xlu0 0
          %776 = vperm.xlu0 %775, %v742
          %v777 = vpop.permute.xlu0 %776
          %780 = vset.pattern.permute.xlu0 0
          %781 = vperm.xlu0 %780, %v743
          %v782 = vpop.permute.xlu0 %781
          %785 = vset.pattern.permute.xlu0 0
          %786 = vperm.xlu0 %785, %v744
          %v787 = vpop.permute.xlu0 %786
          %790 = vset.pattern.permute.xlu0 0
          %791 = vperm.xlu0 %790, %v745
          %v792 = vpop.permute.xlu0 %791
          %795 = vset.pattern.permute.xlu0 0
          %796 = vperm.xlu0 %795, %v746
          %v797 = vpop.permute.xlu0 %796
          %800 = vset.pattern.permute.xlu0 0
          %801 = vperm.xlu0 %800, %v747
          %v802 = vpop.permute.xlu0 %801
          %805 = vset.pattern.permute.xlu0 0
          %806 = vperm.xlu0 %805, %v748
          %v807 = vpop.permute.xlu0 %806
          %810 = vset.pattern.permute.xlu0 0
          %811 = vperm.xlu0 %810, %v749
          %v812 = vpop.permute.xlu0 %811
          %v814 = vsub.f32 %v440, %v777
          %v815 = vsub.f32 %v445, %v782
          %v816 = vsub.f32 %v527, %v787
          %v817 = vsub.f32 %v532, %v792
          %v818 = vsub.f32 %v614, %v797
          %v819 = vsub.f32 %v619, %v802
          %v820 = vsub.f32 %v701, %v807
          %v821 = vsub.f32 %v706, %v812
          %v822 = vmul.f32 %v814, 1.442695
          %v823 = vpow.pop %v822
          %v824 = vmul.f32 %v815, 1.442695
          %v825 = vpow.pop %v824
          %v826 = vmul.f32 %v816, 1.442695
          %v827 = vpow.pop %v826
          %v828 = vmul.f32 %v817, 1.442695
          %v829 = vpow.pop %v828
          %v830 = vmul.f32 %v818, 1.442695
          %v831 = vpow.pop %v830
          %v832 = vmul.f32 %v819, 1.442695
          %v833 = vpow.pop %v832
          %v834 = vmul.f32 %v820, 1.442695
          %v835 = vpow.pop %v834
          %v836 = vmul.f32 %v821, 1.442695
          %v837 = vpow.pop %v836
          %v838 = vld [vmem:[#allocation3] sm:$0xff]
          %v839 = vld [vmem:[#allocation3 + $0x8] sm:$0xff]
          %v840 = vld [vmem:[#allocation3 + $0x10] sm:$0xff]
          %v841 = vld [vmem:[#allocation3 + $0x18] sm:$0xff]
          %v842 = vld [vmem:[#allocation3 + $0x20] sm:$0xff]
          %v843 = vld [vmem:[#allocation3 + $0x28] sm:$0xff]
          %v844 = vld [vmem:[#allocation3 + $0x30] sm:$0xff]
          %v845 = vld [vmem:[#allocation3 + $0x38] sm:$0xff]
          %v846 = vmul.f32 %v759, %v838
          %v847 = vmul.f32 %v761, %v839
          %v848 = vmul.f32 %v763, %v840
          %v849 = vmul.f32 %v765, %v841
          %v850 = vmul.f32 %v767, %v842
          %v851 = vmul.f32 %v769, %v843
          %v852 = vmul.f32 %v771, %v844
          %v853 = vmul.f32 %v773, %v845
          %v854 = vsel %vm717, %v823, 0.0
          %855 = vadd.xlane.f32.xlu0 %v854
          %v856 = vpop.xlane.xlu0 %855
          %v857 = vsel %vm717, %v825, 0.0
          %858 = vadd.xlane.f32.xlu0 %v857
          %v859 = vpop.xlane.xlu0 %858
          %v860 = vsel %vm717, %v827, 0.0
          %861 = vadd.xlane.f32.xlu0 %v860
          %v862 = vpop.xlane.xlu0 %861
          %v863 = vsel %vm717, %v829, 0.0
          %864 = vadd.xlane.f32.xlu0 %v863
          %v865 = vpop.xlane.xlu0 %864
          %v866 = vsel %vm717, %v831, 0.0
          %867 = vadd.xlane.f32.xlu0 %v866
          %v868 = vpop.xlane.xlu0 %867
          %v869 = vsel %vm717, %v833, 0.0
          %870 = vadd.xlane.f32.xlu0 %v869
          %v871 = vpop.xlane.xlu0 %870
          %v872 = vsel %vm717, %v835, 0.0
          %873 = vadd.xlane.f32.xlu0 %v872
          %v874 = vpop.xlane.xlu0 %873
          %v875 = vsel %vm717, %v837, 0.0
          %876 = vadd.xlane.f32.xlu0 %v875
          %v877 = vpop.xlane.xlu0 %876
          %v878 = vadd.f32 %v846, %v856
          %v879 = vadd.f32 %v847, %v859
          %v880 = vadd.f32 %v848, %v862
          %v881 = vadd.f32 %v849, %v865
          %v882 = vadd.f32 %v850, %v868
          %v883 = vadd.f32 %v851, %v871
          %v884 = vadd.f32 %v852, %v874
          %v885 = vadd.f32 %v853, %v877
          %vm886 = vcmask 7168
          %887 = vst.msk [vmem:[#allocation3] sm:$0xff] %vm886, %v878
          %888 = vst.msk [vmem:[#allocation3 + $0x8] sm:$0xff] %vm886, %v879
          %889 = vst.msk [vmem:[#allocation3 + $0x10] sm:$0xff] %vm886, %v880
          %890 = vst.msk [vmem:[#allocation3 + $0x18] sm:$0xff] %vm886, %v881
          %891 = vst.msk [vmem:[#allocation3 + $0x20] sm:$0xff] %vm886, %v882
          %892 = vst.msk [vmem:[#allocation3 + $0x28] sm:$0xff] %vm886, %v883
          %893 = vst.msk [vmem:[#allocation3 + $0x30] sm:$0xff] %vm886, %v884
          %894 = vst.msk [vmem:[#allocation3 + $0x38] sm:$0xff] %vm886, %v885
          %v895 = vld [vmem:[#allocation4] sm:$0xff]
          %v896 = vld [vmem:[#allocation4 + $0x8] sm:$0xff]
          %v897 = vld [vmem:[#allocation4 + $0x10] sm:$0xff]
          %v898 = vld [vmem:[#allocation4 + $0x18] sm:$0xff]
          %v899 = vld [vmem:[#allocation4 + $0x20] sm:$0xff]
          %v900 = vld [vmem:[#allocation4 + $0x28] sm:$0xff]
          %v901 = vld [vmem:[#allocation4 + $0x30] sm:$0xff]
          %v902 = vld [vmem:[#allocation4 + $0x38] sm:$0xff]
          %904 = vset.pattern.permute.xlu0 0
          %905 = vperm.xlu0 %904, %v759
          %v906 = vpop.permute.xlu0 %905
          %909 = vset.pattern.permute.xlu0 0
          %910 = vperm.xlu0 %909, %v761
          %v911 = vpop.permute.xlu0 %910
          %914 = vset.pattern.permute.xlu0 0
          %915 = vperm.xlu0 %914, %v763
          %v916 = vpop.permute.xlu0 %915
          %919 = vset.pattern.permute.xlu0 0
          %920 = vperm.xlu0 %919, %v765
          %v921 = vpop.permute.xlu0 %920
          %924 = vset.pattern.permute.xlu0 0
          %925 = vperm.xlu0 %924, %v767
          %v926 = vpop.permute.xlu0 %925
          %929 = vset.pattern.permute.xlu0 0
          %930 = vperm.xlu0 %929, %v769
          %v931 = vpop.permute.xlu0 %930
          %934 = vset.pattern.permute.xlu0 0
          %935 = vperm.xlu0 %934, %v771
          %v936 = vpop.permute.xlu0 %935
          %939 = vset.pattern.permute.xlu0 0
          %940 = vperm.xlu0 %939, %v773
          %v941 = vpop.permute.xlu0 %940
          %v943 = vmul.f32 %v906, %v895
          %v944 = vmul.f32 %v911, %v896
          %v945 = vmul.f32 %v916, %v897
          %v946 = vmul.f32 %v921, %v898
          %v947 = vmul.f32 %v926, %v899
          %v948 = vmul.f32 %v931, %v900
          %v949 = vmul.f32 %v936, %v901
          %v950 = vmul.f32 %v941, %v902
          %v952 = vsel %vm717, %v823, 0
          %v955 = vsel %vm717, %v825, 0
          %957 = vmatprep.subr.mxu0 0.0
          %958 = vmatpush1.msra.mxu0 0.0
          %959 = vmatprep.subr.mxu0 0.0
          %960 = vmatpush1.msra.mxu0 0.0
          %961 = vmatprep.subr.mxu0 0.0
          %962 = vmatpush1.msra.mxu0 0.0
          %963 = vmatprep.subr.mxu0 0.0
          %964 = vmatpush1.msra.mxu0 0.0
          %965 = vmatprep.subr.mxu0 0.0
          %966 = vmatpush1.msra.mxu0 0.0
          %967 = vmatprep.subr.mxu0 0.0
          %968 = vmatpush1.msra.mxu0 0.0
          %969 = vmatprep.subr.mxu0 0.0
          %970 = vmatpush1.msra.mxu0 0.0
          %971 = vmatprep.subr.mxu0 0.0
          %972 = vmatpush1.msra.mxu0 0.0
          %973 = vmatprep.subr.mxu0 0.0
          %974 = vmatpush1.msra.mxu0 0.0
          %975 = vmatprep.subr.mxu0 0.0
          %976 = vmatpush1.msra.mxu0 0.0
          %977 = vmatprep.subr.mxu0 0.0
          %978 = vmatpush1.msra.mxu0 0.0
          %979 = vmatprep.subr.mxu0 0.0
          %980 = vmatpush1.msra.mxu0 0.0
          %981 = vmatprep.subr.mxu0 0.0
          %982 = vmatpush1.msra.mxu0 0.0
          %983 = vmatprep.subr.mxu0 0.0
          %984 = vmatpush1.msra.mxu0 0.0
          %985 = vmatprep.subr.mxu0 0.0
          %986 = vmatpush1.msra.mxu0 %v353
          %987 = vmatprep.subr.mxu0 0.0
          %988 = vmatpush1.msra.mxu0 %v352
          %989 = vmatprep.subr.mxu0 0.0
          %990 = vmatpush2.msra.mxu0 0.0
          %991 = vmatprep.subr.mxu0 0.0
          %992 = vmatpush2.msra.mxu0 0.0
          %993 = vmatprep.subr.mxu0 0.0
          %994 = vmatpush2.msra.mxu0 0.0
          %995 = vmatprep.subr.mxu0 0.0
          %996 = vmatpush2.msra.mxu0 0.0
          %997 = vmatprep.subr.mxu0 0.0
          %998 = vmatpush2.msra.mxu0 0.0
          %999 = vmatprep.subr.mxu0 0.0
          %1000 = vmatpush2.msra.mxu0 0.0
          %1001 = vmatprep.subr.mxu0 0.0
          %1002 = vmatpush2.msra.mxu0 0.0
          %1003 = vmatprep.subr.mxu0 0.0
          %1004 = vmatpush2.msra.mxu0 0.0
          %1005 = vmatprep.subr.mxu0 0.0
          %1006 = vmatpush2.msra.mxu0 0.0
          %1007 = vmatprep.subr.mxu0 0.0
          %1008 = vmatpush2.msra.mxu0 0.0
          %1009 = vmatprep.subr.mxu0 0.0
          %1010 = vmatpush2.msra.mxu0 0.0
          %1011 = vmatprep.subr.mxu0 0.0
          %1012 = vmatpush2.msra.mxu0 0.0
          %1013 = vmatprep.subr.mxu0 0.0
          %1014 = vmatpush2.msra.mxu0 0.0
          %1015 = vmatprep.subr.mxu0 0.0
          %1016 = vmatpush2.msra.mxu0 0.0
          %1017 = vmatprep.subr.mxu0 0.0
          %1018 = vmatpush2.msra.mxu0 0.0
          %1019 = vmatprep.subr.mxu0 0.0
          %1020 = vmatpush2.msra.mxu0 0.0
          %1021 = vmatprep.mubr.f32.mxu0 0.0
          %1022 = vmatmul.mubr.f32.gmra.mxu0 %v952
          %v1023 = vpop.f32.mrf.mxu0
          %v1024 = vadd.f32 0.0, %v1023
          %v1025 = vpop.f32.mrf.mxu0
          %1026 = vmatprep.mubr.f32.mxu0 0.0
          %1027 = vmatmul.mubr.f32.gmra.mxu0 %v955
          %v1028 = vpop.f32.mrf.mxu0
          %v1029 = vadd.f32 0.0, %v1028
          %v1030 = vpop.f32.mrf.mxu0
          %1031 = vdwg.mxu0
          %v1033 = vsel %vm717, %v827, 0
          %v1036 = vsel %vm717, %v829, 0
          %1038 = vmatprep.subr.mxu0 0.0
          %1039 = vmatpush1.msra.mxu0 0.0
          %1040 = vmatprep.subr.mxu0 0.0
          %1041 = vmatpush1.msra.mxu0 0.0
          %1042 = vmatprep.subr.mxu0 0.0
          %1043 = vmatpush1.msra.mxu0 0.0
          %1044 = vmatprep.subr.mxu0 0.0
          %1045 = vmatpush1.msra.mxu0 0.0
          %1046 = vmatprep.subr.mxu0 0.0
          %1047 = vmatpush1.msra.mxu0 0.0
          %1048 = vmatprep.subr.mxu0 0.0
          %1049 = vmatpush1.msra.mxu0 0.0
          %1050 = vmatprep.subr.mxu0 0.0
          %1051 = vmatpush1.msra.mxu0 0.0
          %1052 = vmatprep.subr.mxu0 0.0
          %1053 = vmatpush1.msra.mxu0 0.0
          %1054 = vmatprep.subr.mxu0 0.0
          %1055 = vmatpush1.msra.mxu0 0.0
          %1056 = vmatprep.subr.mxu0 0.0
          %1057 = vmatpush1.msra.mxu0 0.0
          %1058 = vmatprep.subr.mxu0 0.0
          %1059 = vmatpush1.msra.mxu0 0.0
          %1060 = vmatprep.subr.mxu0 0.0
          %1061 = vmatpush1.msra.mxu0 0.0
          %1062 = vmatprep.subr.mxu0 0.0
          %1063 = vmatpush1.msra.mxu0 0.0
          %1064 = vmatprep.subr.mxu0 0.0
          %1065 = vmatpush1.msra.mxu0 0.0
          %1066 = vmatprep.subr.mxu0 0.0
          %1067 = vmatpush1.msra.mxu0 %v355
          %1068 = vmatprep.subr.mxu0 0.0
          %1069 = vmatpush1.msra.mxu0 %v354
          %1070 = vmatprep.subr.mxu0 0.0
          %1071 = vmatpush2.msra.mxu0 0.0
          %1072 = vmatprep.subr.mxu0 0.0
          %1073 = vmatpush2.msra.mxu0 0.0
          %1074 = vmatprep.subr.mxu0 0.0
          %1075 = vmatpush2.msra.mxu0 0.0
          %1076 = vmatprep.subr.mxu0 0.0
          %1077 = vmatpush2.msra.mxu0 0.0
          %1078 = vmatprep.subr.mxu0 0.0
          %1079 = vmatpush2.msra.mxu0 0.0
          %1080 = vmatprep.subr.mxu0 0.0
          %1081 = vmatpush2.msra.mxu0 0.0
          %1082 = vmatprep.subr.mxu0 0.0
          %1083 = vmatpush2.msra.mxu0 0.0
          %1084 = vmatprep.subr.mxu0 0.0
          %1085 = vmatpush2.msra.mxu0 0.0
          %1086 = vmatprep.subr.mxu0 0.0
          %1087 = vmatpush2.msra.mxu0 0.0
          %1088 = vmatprep.subr.mxu0 0.0
          %1089 = vmatpush2.msra.mxu0 0.0
          %1090 = vmatprep.subr.mxu0 0.0
          %1091 = vmatpush2.msra.mxu0 0.0
          %1092 = vmatprep.subr.mxu0 0.0
          %1093 = vmatpush2.msra.mxu0 0.0
          %1094 = vmatprep.subr.mxu0 0.0
          %1095 = vmatpush2.msra.mxu0 0.0
          %1096 = vmatprep.subr.mxu0 0.0
          %1097 = vmatpush2.msra.mxu0 0.0
          %1098 = vmatprep.subr.mxu0 0.0
          %1099 = vmatpush2.msra.mxu0 0.0
          %1100 = vmatprep.subr.mxu0 0.0
          %1101 = vmatpush2.msra.mxu0 0.0
          %1102 = vmatprep.mubr.f32.mxu0 0.0
          %1103 = vmatmul.mubr.f32.gmra.mxu0 %v1033
          %v1104 = vpop.f32.mrf.mxu0
          %v1105 = vadd.f32 0.0, %v1104
          %v1106 = vpop.f32.mrf.mxu0
          %1107 = vmatprep.mubr.f32.mxu0 0.0
          %1108 = vmatmul.mubr.f32.gmra.mxu0 %v1036
          %v1109 = vpop.f32.mrf.mxu0
          %v1110 = vadd.f32 0.0, %v1109
          %v1111 = vpop.f32.mrf.mxu0
          %1112 = vdwg.mxu0
          %v1114 = vsel %vm717, %v831, 0
          %v1117 = vsel %vm717, %v833, 0
          %1119 = vmatprep.subr.mxu0 0.0
          %1120 = vmatpush1.msra.mxu0 0.0
          %1121 = vmatprep.subr.mxu0 0.0
          %1122 = vmatpush1.msra.mxu0 0.0
          %1123 = vmatprep.subr.mxu0 0.0
          %1124 = vmatpush1.msra.mxu0 0.0
          %1125 = vmatprep.subr.mxu0 0.0
          %1126 = vmatpush1.msra.mxu0 0.0
          %1127 = vmatprep.subr.mxu0 0.0
          %1128 = vmatpush1.msra.mxu0 0.0
          %1129 = vmatprep.subr.mxu0 0.0
          %1130 = vmatpush1.msra.mxu0 0.0
          %1131 = vmatprep.subr.mxu0 0.0
          %1132 = vmatpush1.msra.mxu0 0.0
          %1133 = vmatprep.subr.mxu0 0.0
          %1134 = vmatpush1.msra.mxu0 0.0
          %1135 = vmatprep.subr.mxu0 0.0
          %1136 = vmatpush1.msra.mxu0 0.0
          %1137 = vmatprep.subr.mxu0 0.0
          %1138 = vmatpush1.msra.mxu0 0.0
          %1139 = vmatprep.subr.mxu0 0.0
          %1140 = vmatpush1.msra.mxu0 0.0
          %1141 = vmatprep.subr.mxu0 0.0
          %1142 = vmatpush1.msra.mxu0 0.0
          %1143 = vmatprep.subr.mxu0 0.0
          %1144 = vmatpush1.msra.mxu0 0.0
          %1145 = vmatprep.subr.mxu0 0.0
          %1146 = vmatpush1.msra.mxu0 0.0
          %1147 = vmatprep.subr.mxu0 0.0
          %1148 = vmatpush1.msra.mxu0 %v357
          %1149 = vmatprep.subr.mxu0 0.0
          %1150 = vmatpush1.msra.mxu0 %v356
          %1151 = vmatprep.subr.mxu0 0.0
          %1152 = vmatpush2.msra.mxu0 0.0
          %1153 = vmatprep.subr.mxu0 0.0
          %1154 = vmatpush2.msra.mxu0 0.0
          %1155 = vmatprep.subr.mxu0 0.0
          %1156 = vmatpush2.msra.mxu0 0.0
          %1157 = vmatprep.subr.mxu0 0.0
          %1158 = vmatpush2.msra.mxu0 0.0
          %1159 = vmatprep.subr.mxu0 0.0
          %1160 = vmatpush2.msra.mxu0 0.0
          %1161 = vmatprep.subr.mxu0 0.0
          %1162 = vmatpush2.msra.mxu0 0.0
          %1163 = vmatprep.subr.mxu0 0.0
          %1164 = vmatpush2.msra.mxu0 0.0
          %1165 = vmatprep.subr.mxu0 0.0
          %1166 = vmatpush2.msra.mxu0 0.0
          %1167 = vmatprep.subr.mxu0 0.0
          %1168 = vmatpush2.msra.mxu0 0.0
          %1169 = vmatprep.subr.mxu0 0.0
          %1170 = vmatpush2.msra.mxu0 0.0
          %1171 = vmatprep.subr.mxu0 0.0
          %1172 = vmatpush2.msra.mxu0 0.0
          %1173 = vmatprep.subr.mxu0 0.0
          %1174 = vmatpush2.msra.mxu0 0.0
          %1175 = vmatprep.subr.mxu0 0.0
          %1176 = vmatpush2.msra.mxu0 0.0
          %1177 = vmatprep.subr.mxu0 0.0
          %1178 = vmatpush2.msra.mxu0 0.0
          %1179 = vmatprep.subr.mxu0 0.0
          %1180 = vmatpush2.msra.mxu0 0.0
          %1181 = vmatprep.subr.mxu0 0.0
          %1182 = vmatpush2.msra.mxu0 0.0
          %1183 = vmatprep.mubr.f32.mxu0 0.0
          %1184 = vmatmul.mubr.f32.gmra.mxu0 %v1114
          %v1185 = vpop.f32.mrf.mxu0
          %v1186 = vadd.f32 0.0, %v1185
          %v1187 = vpop.f32.mrf.mxu0
          %1188 = vmatprep.mubr.f32.mxu0 0.0
          %1189 = vmatmul.mubr.f32.gmra.mxu0 %v1117
          %v1190 = vpop.f32.mrf.mxu0
          %v1191 = vadd.f32 0.0, %v1190
          %v1192 = vpop.f32.mrf.mxu0
          %1193 = vdwg.mxu0
          %v1195 = vsel %vm717, %v835, 0
          %v1198 = vsel %vm717, %v837, 0
          %1200 = vmatprep.subr.mxu0 0.0
          %1201 = vmatpush1.msra.mxu0 0.0
          %1202 = vmatprep.subr.mxu0 0.0
          %1203 = vmatpush1.msra.mxu0 0.0
          %1204 = vmatprep.subr.mxu0 0.0
          %1205 = vmatpush1.msra.mxu0 0.0
          %1206 = vmatprep.subr.mxu0 0.0
          %1207 = vmatpush1.msra.mxu0 0.0
          %1208 = vmatprep.subr.mxu0 0.0
          %1209 = vmatpush1.msra.mxu0 0.0
          %1210 = vmatprep.subr.mxu0 0.0
          %1211 = vmatpush1.msra.mxu0 0.0
          %1212 = vmatprep.subr.mxu0 0.0
          %1213 = vmatpush1.msra.mxu0 0.0
          %1214 = vmatprep.subr.mxu0 0.0
          %1215 = vmatpush1.msra.mxu0 0.0
          %1216 = vmatprep.subr.mxu0 0.0
          %1217 = vmatpush1.msra.mxu0 0.0
          %1218 = vmatprep.subr.mxu0 0.0
          %1219 = vmatpush1.msra.mxu0 0.0
          %1220 = vmatprep.subr.mxu0 0.0
          %1221 = vmatpush1.msra.mxu0 0.0
          %1222 = vmatprep.subr.mxu0 0.0
          %1223 = vmatpush1.msra.mxu0 0.0
          %1224 = vmatprep.subr.mxu0 0.0
          %1225 = vmatpush1.msra.mxu0 0.0
          %1226 = vmatprep.subr.mxu0 0.0
          %1227 = vmatpush1.msra.mxu0 0.0
          %1228 = vmatprep.subr.mxu0 0.0
          %1229 = vmatpush1.msra.mxu0 %v359
          %1230 = vmatprep.subr.mxu0 0.0
          %1231 = vmatpush1.msra.mxu0 %v358
          %1232 = vmatprep.subr.mxu0 0.0
          %1233 = vmatpush2.msra.mxu0 0.0
          %1234 = vmatprep.subr.mxu0 0.0
          %1235 = vmatpush2.msra.mxu0 0.0
          %1236 = vmatprep.subr.mxu0 0.0
          %1237 = vmatpush2.msra.mxu0 0.0
          %1238 = vmatprep.subr.mxu0 0.0
          %1239 = vmatpush2.msra.mxu0 0.0
          %1240 = vmatprep.subr.mxu0 0.0
          %1241 = vmatpush2.msra.mxu0 0.0
          %1242 = vmatprep.subr.mxu0 0.0
          %1243 = vmatpush2.msra.mxu0 0.0
          %1244 = vmatprep.subr.mxu0 0.0
          %1245 = vmatpush2.msra.mxu0 0.0
          %1246 = vmatprep.subr.mxu0 0.0
          %1247 = vmatpush2.msra.mxu0 0.0
          %1248 = vmatprep.subr.mxu0 0.0
          %1249 = vmatpush2.msra.mxu0 0.0
          %1250 = vmatprep.subr.mxu0 0.0
          %1251 = vmatpush2.msra.mxu0 0.0
          %1252 = vmatprep.subr.mxu0 0.0
          %1253 = vmatpush2.msra.mxu0 0.0
          %1254 = vmatprep.subr.mxu0 0.0
          %1255 = vmatpush2.msra.mxu0 0.0
          %1256 = vmatprep.subr.mxu0 0.0
          %1257 = vmatpush2.msra.mxu0 0.0
          %1258 = vmatprep.subr.mxu0 0.0
          %1259 = vmatpush2.msra.mxu0 0.0
          %1260 = vmatprep.subr.mxu0 0.0
          %1261 = vmatpush2.msra.mxu0 0.0
          %1262 = vmatprep.subr.mxu0 0.0
          %1263 = vmatpush2.msra.mxu0 0.0
          %1264 = vmatprep.mubr.f32.mxu0 0.0
          %1265 = vmatmul.mubr.f32.gmra.mxu0 %v1195
          %v1266 = vpop.f32.mrf.mxu0
          %v1267 = vadd.f32 0.0, %v1266
          %v1268 = vpop.f32.mrf.mxu0
          %1269 = vmatprep.mubr.f32.mxu0 0.0
          %1270 = vmatmul.mubr.f32.gmra.mxu0 %v1198
          %v1271 = vpop.f32.mrf.mxu0
          %v1272 = vadd.f32 0.0, %v1271
          %v1273 = vpop.f32.mrf.mxu0
          %1274 = vdwg.mxu0
          %v1275 = vadd.f32 %v943, %v1024
          %v1276 = vadd.f32 %v944, %v1029
          %v1277 = vadd.f32 %v945, %v1105
          %v1278 = vadd.f32 %v946, %v1110
          %v1279 = vadd.f32 %v947, %v1186
          %v1280 = vadd.f32 %v948, %v1191
          %v1281 = vadd.f32 %v949, %v1267
          %v1282 = vadd.f32 %v950, %v1272
          %1283 = vst.msk [vmem:[#allocation4] sm:$0xff] %vm360, %v1275
          %1284 = vst.msk [vmem:[#allocation4 + $0x8] sm:$0xff] %vm360, %v1276
          %1285 = vst.msk [vmem:[#allocation4 + $0x10] sm:$0xff] %vm360, %v1277
          %1286 = vst.msk [vmem:[#allocation4 + $0x18] sm:$0xff] %vm360, %v1278
          %1287 = vst.msk [vmem:[#allocation4 + $0x20] sm:$0xff] %vm360, %v1279
          %1288 = vst.msk [vmem:[#allocation4 + $0x28] sm:$0xff] %vm360, %v1280
          %1289 = vst.msk [vmem:[#allocation4 + $0x30] sm:$0xff] %vm360, %v1281
          %1290 = vst.msk [vmem:[#allocation4 + $0x38] sm:$0xff] %vm360, %v1282
          %1291 = vst.msk [vmem:[#allocation2] sm:$0xff] %vm886, %v742
          %1292 = vst.msk [vmem:[#allocation2 + $0x8] sm:$0xff] %vm886, %v743
          %1293 = vst.msk [vmem:[#allocation2 + $0x10] sm:$0xff] %vm886, %v744
          %1294 = vst.msk [vmem:[#allocation2 + $0x18] sm:$0xff] %vm886, %v745
          %1295 = vst.msk [vmem:[#allocation2 + $0x20] sm:$0xff] %vm886, %v746
          %1296 = vst.msk [vmem:[#allocation2 + $0x28] sm:$0xff] %vm886, %v747
          %1297 = vst.msk [vmem:[#allocation2 + $0x30] sm:$0xff] %vm886, %v748
          %1298 = vst.msk [vmem:[#allocation2 + $0x38] sm:$0xff] %vm886, %v749
        $region40: #{tpu_custom_call.1} parent=31 // pred_fallthru
          _
        %p1299 = scmp.eq.s32.totalorder %s301, %s300
        // Predicated region
        $region41: #{tpu_custom_call.1} parent=31 // pred_check
          %p1300 = pneg %p1299
        $region42: #{tpu_custom_call.1} parent=31 // pred_check_branch
          %1302 = sbr.rel (%p1300) target = $region44
        $region43: #{tpu_custom_call.1} parent=31 // pred_region
          %v1303 = vld [vmem:[%s271] sm:$0xff]
          %v1304 = vld [vmem:[%s271 + $0x8] sm:$0xff]
          %v1305 = vld [vmem:[%s271 + $0x10] sm:$0xff]
          %v1306 = vld [vmem:[%s271 + $0x18] sm:$0xff]
          %v1307 = vld [vmem:[%s271 + $0x20] sm:$0xff]
          %v1308 = vld [vmem:[%s271 + $0x28] sm:$0xff]
          %v1309 = vld [vmem:[%s271 + $0x30] sm:$0xff]
          %v1310 = vld [vmem:[%s271 + $0x38] sm:$0xff]
          %v1311 = vld [vmem:[%s283] sm:$0xff]
          %v1312 = vld [vmem:[%s283 + $0x8] sm:$0xff]
          %v1313 = vld [vmem:[%s283 + $0x10] sm:$0xff]
          %v1314 = vld [vmem:[%s283 + $0x18] sm:$0xff]
          %v1315 = vld [vmem:[%s283 + $0x20] sm:$0xff]
          %v1316 = vld [vmem:[%s283 + $0x28] sm:$0xff]
          %v1317 = vld [vmem:[%s283 + $0x30] sm:$0xff]
          %v1318 = vld [vmem:[%s283 + $0x38] sm:$0xff]
          %v1319 = vld [vmem:[%s295] sm:$0xff]
          %v1320 = vld [vmem:[%s295 + $0x8] sm:$0xff]
          %v1321 = vld [vmem:[%s295 + $0x10] sm:$0xff]
          %v1322 = vld [vmem:[%s295 + $0x18] sm:$0xff]
          %v1323 = vld [vmem:[%s295 + $0x20] sm:$0xff]
          %v1324 = vld [vmem:[%s295 + $0x28] sm:$0xff]
          %v1325 = vld [vmem:[%s295 + $0x30] sm:$0xff]
          %v1326 = vld [vmem:[%s295 + $0x38] sm:$0xff]
          %vm1327 = vcmask 64512
          %v1329 = vsel %vm1327, %v1303, 0
          %v1332 = vsel %vm1327, %v1304, 0
          %v1335 = vsel %vm1327, %v1311, 0
          %v1338 = vsel %vm1327, %v1312, 0
          %1340 = vmatprep.subr.mxu0 0.0
          %1341 = vmatpush1.xpose.msra.mxu0 0.0
          %1342 = vmatprep.subr.mxu0 0.0
          %1343 = vmatpush1.xpose.msra.mxu0 0.0
          %1344 = vmatprep.subr.mxu0 0.0
          %1345 = vmatpush1.xpose.msra.mxu0 0.0
          %1346 = vmatprep.subr.mxu0 0.0
          %1347 = vmatpush1.xpose.msra.mxu0 0.0
          %1348 = vmatprep.subr.mxu0 0.0
          %1349 = vmatpush1.xpose.msra.mxu0 0.0
          %1350 = vmatprep.subr.mxu0 0.0
          %1351 = vmatpush1.xpose.msra.mxu0 0.0
          %1352 = vmatprep.subr.mxu0 0.0
          %1353 = vmatpush1.xpose.msra.mxu0 0.0
          %1354 = vmatprep.subr.mxu0 0.0
          %1355 = vmatpush1.xpose.msra.mxu0 0.0
          %1356 = vmatprep.subr.mxu0 0.0
          %1357 = vmatpush1.xpose.msra.mxu0 0.0
          %1358 = vmatprep.subr.mxu0 0.0
          %1359 = vmatpush1.xpose.msra.mxu0 0.0
          %1360 = vmatprep.subr.mxu0 0.0
          %1361 = vmatpush1.xpose.msra.mxu0 0.0
          %1362 = vmatprep.subr.mxu0 0.0
          %1363 = vmatpush1.xpose.msra.mxu0 0.0
          %1364 = vmatprep.subr.mxu0 0.0
          %1365 = vmatpush1.xpose.msra.mxu0 0.0
          %1366 = vmatprep.subr.mxu0 0.0
          %1367 = vmatpush1.xpose.msra.mxu0 0.0
          %1368 = vmatprep.subr.mxu0 0.0
          %1369 = vmatpush1.xpose.msra.mxu0 %v1338
          %1370 = vmatprep.subr.mxu0 0.0
          %1371 = vmatpush1.xpose.msra.mxu0 %v1335
          %1372 = vmatprep.subr.mxu0 0.0
          %1373 = vmatpush2.xpose.msra.mxu0 0.0
          %1374 = vmatprep.subr.mxu0 0.0
          %1375 = vmatpush2.xpose.msra.mxu0 0.0
          %1376 = vmatprep.subr.mxu0 0.0
          %1377 = vmatpush2.xpose.msra.mxu0 0.0
          %1378 = vmatprep.subr.mxu0 0.0
          %1379 = vmatpush2.xpose.msra.mxu0 0.0
          %1380 = vmatprep.subr.mxu0 0.0
          %1381 = vmatpush2.xpose.msra.mxu0 0.0
          %1382 = vmatprep.subr.mxu0 0.0
          %1383 = vmatpush2.xpose.msra.mxu0 0.0
          %1384 = vmatprep.subr.mxu0 0.0
          %1385 = vmatpush2.xpose.msra.mxu0 0.0
          %1386 = vmatprep.subr.mxu0 0.0
          %1387 = vmatpush2.xpose.msra.mxu0 0.0
          %1388 = vmatprep.subr.mxu0 0.0
          %1389 = vmatpush2.xpose.msra.mxu0 0.0
          %1390 = vmatprep.subr.mxu0 0.0
          %1391 = vmatpush2.xpose.msra.mxu0 0.0
          %1392 = vmatprep.subr.mxu0 0.0
          %1393 = vmatpush2.xpose.msra.mxu0 0.0
          %1394 = vmatprep.subr.mxu0 0.0
          %1395 = vmatpush2.xpose.msra.mxu0 0.0
          %1396 = vmatprep.subr.mxu0 0.0
          %1397 = vmatpush2.xpose.msra.mxu0 0.0
          %1398 = vmatprep.subr.mxu0 0.0
          %1399 = vmatpush2.xpose.msra.mxu0 0.0
          %1400 = vmatprep.subr.mxu0 0.0
          %1401 = vmatpush2.xpose.msra.mxu0 0.0
          %1402 = vmatprep.subr.mxu0 0.0
          %1403 = vmatpush2.xpose.msra.mxu0 0.0
          %1404 = vmatprep.mubr.f32.mxu0 0.0
          %1405 = vmatmul.mubr.f32.gmra.mxu0 %v1329
          %v1406 = vpop.f32.mrf.mxu0
          %v1407 = vadd.f32 0.0, %v1406
          %v1408 = vpop.f32.mrf.mxu0
          %1409 = vmatprep.mubr.f32.mxu0 0.0
          %1410 = vmatmul.mubr.f32.gmra.mxu0 %v1332
          %v1411 = vpop.f32.mrf.mxu0
          %v1412 = vadd.f32 0.0, %v1411
          %v1413 = vpop.f32.mrf.mxu0
          %1414 = vdwg.mxu0
          %v1416 = vsel %vm1327, %v1305, 0
          %v1419 = vsel %vm1327, %v1306, 0
          %v1422 = vsel %vm1327, %v1313, 0
          %v1425 = vsel %vm1327, %v1314, 0
          %1427 = vmatprep.subr.mxu0 0.0
          %1428 = vmatpush1.xpose.msra.mxu0 0.0
          %1429 = vmatprep.subr.mxu0 0.0
          %1430 = vmatpush1.xpose.msra.mxu0 0.0
          %1431 = vmatprep.subr.mxu0 0.0
          %1432 = vmatpush1.xpose.msra.mxu0 0.0
          %1433 = vmatprep.subr.mxu0 0.0
          %1434 = vmatpush1.xpose.msra.mxu0 0.0
          %1435 = vmatprep.subr.mxu0 0.0
          %1436 = vmatpush1.xpose.msra.mxu0 0.0
          %1437 = vmatprep.subr.mxu0 0.0
          %1438 = vmatpush1.xpose.msra.mxu0 0.0
          %1439 = vmatprep.subr.mxu0 0.0
          %1440 = vmatpush1.xpose.msra.mxu0 0.0
          %1441 = vmatprep.subr.mxu0 0.0
          %1442 = vmatpush1.xpose.msra.mxu0 0.0
          %1443 = vmatprep.subr.mxu0 0.0
          %1444 = vmatpush1.xpose.msra.mxu0 0.0
          %1445 = vmatprep.subr.mxu0 0.0
          %1446 = vmatpush1.xpose.msra.mxu0 0.0
          %1447 = vmatprep.subr.mxu0 0.0
          %1448 = vmatpush1.xpose.msra.mxu0 0.0
          %1449 = vmatprep.subr.mxu0 0.0
          %1450 = vmatpush1.xpose.msra.mxu0 0.0
          %1451 = vmatprep.subr.mxu0 0.0
          %1452 = vmatpush1.xpose.msra.mxu0 0.0
          %1453 = vmatprep.subr.mxu0 0.0
          %1454 = vmatpush1.xpose.msra.mxu0 0.0
          %1455 = vmatprep.subr.mxu0 0.0
          %1456 = vmatpush1.xpose.msra.mxu0 %v1425
          %1457 = vmatprep.subr.mxu0 0.0
          %1458 = vmatpush1.xpose.msra.mxu0 %v1422
          %1459 = vmatprep.subr.mxu0 0.0
          %1460 = vmatpush2.xpose.msra.mxu0 0.0
          %1461 = vmatprep.subr.mxu0 0.0
          %1462 = vmatpush2.xpose.msra.mxu0 0.0
          %1463 = vmatprep.subr.mxu0 0.0
          %1464 = vmatpush2.xpose.msra.mxu0 0.0
          %1465 = vmatprep.subr.mxu0 0.0
          %1466 = vmatpush2.xpose.msra.mxu0 0.0
          %1467 = vmatprep.subr.mxu0 0.0
          %1468 = vmatpush2.xpose.msra.mxu0 0.0
          %1469 = vmatprep.subr.mxu0 0.0
          %1470 = vmatpush2.xpose.msra.mxu0 0.0
          %1471 = vmatprep.subr.mxu0 0.0
          %1472 = vmatpush2.xpose.msra.mxu0 0.0
          %1473 = vmatprep.subr.mxu0 0.0
          %1474 = vmatpush2.xpose.msra.mxu0 0.0
          %1475 = vmatprep.subr.mxu0 0.0
          %1476 = vmatpush2.xpose.msra.mxu0 0.0
          %1477 = vmatprep.subr.mxu0 0.0
          %1478 = vmatpush2.xpose.msra.mxu0 0.0
          %1479 = vmatprep.subr.mxu0 0.0
          %1480 = vmatpush2.xpose.msra.mxu0 0.0
          %1481 = vmatprep.subr.mxu0 0.0
          %1482 = vmatpush2.xpose.msra.mxu0 0.0
          %1483 = vmatprep.subr.mxu0 0.0
          %1484 = vmatpush2.xpose.msra.mxu0 0.0
          %1485 = vmatprep.subr.mxu0 0.0
          %1486 = vmatpush2.xpose.msra.mxu0 0.0
          %1487 = vmatprep.subr.mxu0 0.0
          %1488 = vmatpush2.xpose.msra.mxu0 0.0
          %1489 = vmatprep.subr.mxu0 0.0
          %1490 = vmatpush2.xpose.msra.mxu0 0.0
          %1491 = vmatprep.mubr.f32.mxu0 0.0
          %1492 = vmatmul.mubr.f32.gmra.mxu0 %v1416
          %v1493 = vpop.f32.mrf.mxu0
          %v1494 = vadd.f32 0.0, %v1493
          %v1495 = vpop.f32.mrf.mxu0
          %1496 = vmatprep.mubr.f32.mxu0 0.0
          %1497 = vmatmul.mubr.f32.gmra.mxu0 %v1419
          %v1498 = vpop.f32.mrf.mxu0
          %v1499 = vadd.f32 0.0, %v1498
          %v1500 = vpop.f32.mrf.mxu0
          %1501 = vdwg.mxu0
          %v1503 = vsel %vm1327, %v1307, 0
          %v1506 = vsel %vm1327, %v1308, 0
          %v1509 = vsel %vm1327, %v1315, 0
          %v1512 = vsel %vm1327, %v1316, 0
          %1514 = vmatprep.subr.mxu0 0.0
          %1515 = vmatpush1.xpose.msra.mxu0 0.0
          %1516 = vmatprep.subr.mxu0 0.0
          %1517 = vmatpush1.xpose.msra.mxu0 0.0
          %1518 = vmatprep.subr.mxu0 0.0
          %1519 = vmatpush1.xpose.msra.mxu0 0.0
          %1520 = vmatprep.subr.mxu0 0.0
          %1521 = vmatpush1.xpose.msra.mxu0 0.0
          %1522 = vmatprep.subr.mxu0 0.0
          %1523 = vmatpush1.xpose.msra.mxu0 0.0
          %1524 = vmatprep.subr.mxu0 0.0
          %1525 = vmatpush1.xpose.msra.mxu0 0.0
          %1526 = vmatprep.subr.mxu0 0.0
          %1527 = vmatpush1.xpose.msra.mxu0 0.0
          %1528 = vmatprep.subr.mxu0 0.0
          %1529 = vmatpush1.xpose.msra.mxu0 0.0
          %1530 = vmatprep.subr.mxu0 0.0
          %1531 = vmatpush1.xpose.msra.mxu0 0.0
          %1532 = vmatprep.subr.mxu0 0.0
          %1533 = vmatpush1.xpose.msra.mxu0 0.0
          %1534 = vmatprep.subr.mxu0 0.0
          %1535 = vmatpush1.xpose.msra.mxu0 0.0
          %1536 = vmatprep.subr.mxu0 0.0
          %1537 = vmatpush1.xpose.msra.mxu0 0.0
          %1538 = vmatprep.subr.mxu0 0.0
          %1539 = vmatpush1.xpose.msra.mxu0 0.0
          %1540 = vmatprep.subr.mxu0 0.0
          %1541 = vmatpush1.xpose.msra.mxu0 0.0
          %1542 = vmatprep.subr.mxu0 0.0
          %1543 = vmatpush1.xpose.msra.mxu0 %v1512
          %1544 = vmatprep.subr.mxu0 0.0
          %1545 = vmatpush1.xpose.msra.mxu0 %v1509
          %1546 = vmatprep.subr.mxu0 0.0
          %1547 = vmatpush2.xpose.msra.mxu0 0.0
          %1548 = vmatprep.subr.mxu0 0.0
          %1549 = vmatpush2.xpose.msra.mxu0 0.0
          %1550 = vmatprep.subr.mxu0 0.0
          %1551 = vmatpush2.xpose.msra.mxu0 0.0
          %1552 = vmatprep.subr.mxu0 0.0
          %1553 = vmatpush2.xpose.msra.mxu0 0.0
          %1554 = vmatprep.subr.mxu0 0.0
          %1555 = vmatpush2.xpose.msra.mxu0 0.0
          %1556 = vmatprep.subr.mxu0 0.0
          %1557 = vmatpush2.xpose.msra.mxu0 0.0
          %1558 = vmatprep.subr.mxu0 0.0
          %1559 = vmatpush2.xpose.msra.mxu0 0.0
          %1560 = vmatprep.subr.mxu0 0.0
          %1561 = vmatpush2.xpose.msra.mxu0 0.0
          %1562 = vmatprep.subr.mxu0 0.0
          %1563 = vmatpush2.xpose.msra.mxu0 0.0
          %1564 = vmatprep.subr.mxu0 0.0
          %1565 = vmatpush2.xpose.msra.mxu0 0.0
          %1566 = vmatprep.subr.mxu0 0.0
          %1567 = vmatpush2.xpose.msra.mxu0 0.0
          %1568 = vmatprep.subr.mxu0 0.0
          %1569 = vmatpush2.xpose.msra.mxu0 0.0
          %1570 = vmatprep.subr.mxu0 0.0
          %1571 = vmatpush2.xpose.msra.mxu0 0.0
          %1572 = vmatprep.subr.mxu0 0.0
          %1573 = vmatpush2.xpose.msra.mxu0 0.0
          %1574 = vmatprep.subr.mxu0 0.0
          %1575 = vmatpush2.xpose.msra.mxu0 0.0
          %1576 = vmatprep.subr.mxu0 0.0
          %1577 = vmatpush2.xpose.msra.mxu0 0.0
          %1578 = vmatprep.mubr.f32.mxu0 0.0
          %1579 = vmatmul.mubr.f32.gmra.mxu0 %v1503
          %v1580 = vpop.f32.mrf.mxu0
          %v1581 = vadd.f32 0.0, %v1580
          %v1582 = vpop.f32.mrf.mxu0
          %1583 = vmatprep.mubr.f32.mxu0 0.0
          %1584 = vmatmul.mubr.f32.gmra.mxu0 %v1506
          %v1585 = vpop.f32.mrf.mxu0
          %v1586 = vadd.f32 0.0, %v1585
          %v1587 = vpop.f32.mrf.mxu0
          %1588 = vdwg.mxu0
          %v1590 = vsel %vm1327, %v1309, 0
          %v1593 = vsel %vm1327, %v1310, 0
          %v1596 = vsel %vm1327, %v1317, 0
          %v1599 = vsel %vm1327, %v1318, 0
          %1601 = vmatprep.subr.mxu0 0.0
          %1602 = vmatpush1.xpose.msra.mxu0 0.0
          %1603 = vmatprep.subr.mxu0 0.0
          %1604 = vmatpush1.xpose.msra.mxu0 0.0
          %1605 = vmatprep.subr.mxu0 0.0
          %1606 = vmatpush1.xpose.msra.mxu0 0.0
          %1607 = vmatprep.subr.mxu0 0.0
          %1608 = vmatpush1.xpose.msra.mxu0 0.0
          %1609 = vmatprep.subr.mxu0 0.0
          %1610 = vmatpush1.xpose.msra.mxu0 0.0
          %1611 = vmatprep.subr.mxu0 0.0
          %1612 = vmatpush1.xpose.msra.mxu0 0.0
          %1613 = vmatprep.subr.mxu0 0.0
          %1614 = vmatpush1.xpose.msra.mxu0 0.0
          %1615 = vmatprep.subr.mxu0 0.0
          %1616 = vmatpush1.xpose.msra.mxu0 0.0
          %1617 = vmatprep.subr.mxu0 0.0
          %1618 = vmatpush1.xpose.msra.mxu0 0.0
          %1619 = vmatprep.subr.mxu0 0.0
          %1620 = vmatpush1.xpose.msra.mxu0 0.0
          %1621 = vmatprep.subr.mxu0 0.0
          %1622 = vmatpush1.xpose.msra.mxu0 0.0
          %1623 = vmatprep.subr.mxu0 0.0
          %1624 = vmatpush1.xpose.msra.mxu0 0.0
          %1625 = vmatprep.subr.mxu0 0.0
          %1626 = vmatpush1.xpose.msra.mxu0 0.0
          %1627 = vmatprep.subr.mxu0 0.0
          %1628 = vmatpush1.xpose.msra.mxu0 0.0
          %1629 = vmatprep.subr.mxu0 0.0
          %1630 = vmatpush1.xpose.msra.mxu0 %v1599
          %1631 = vmatprep.subr.mxu0 0.0
          %1632 = vmatpush1.xpose.msra.mxu0 %v1596
          %1633 = vmatprep.subr.mxu0 0.0
          %1634 = vmatpush2.xpose.msra.mxu0 0.0
          %1635 = vmatprep.subr.mxu0 0.0
          %1636 = vmatpush2.xpose.msra.mxu0 0.0
          %1637 = vmatprep.subr.mxu0 0.0
          %1638 = vmatpush2.xpose.msra.mxu0 0.0
          %1639 = vmatprep.subr.mxu0 0.0
          %1640 = vmatpush2.xpose.msra.mxu0 0.0
          %1641 = vmatprep.subr.mxu0 0.0
          %1642 = vmatpush2.xpose.msra.mxu0 0.0
          %1643 = vmatprep.subr.mxu0 0.0
          %1644 = vmatpush2.xpose.msra.mxu0 0.0
          %1645 = vmatprep.subr.mxu0 0.0
          %1646 = vmatpush2.xpose.msra.mxu0 0.0
          %1647 = vmatprep.subr.mxu0 0.0
          %1648 = vmatpush2.xpose.msra.mxu0 0.0
          %1649 = vmatprep.subr.mxu0 0.0
          %1650 = vmatpush2.xpose.msra.mxu0 0.0
          %1651 = vmatprep.subr.mxu0 0.0
          %1652 = vmatpush2.xpose.msra.mxu0 0.0
          %1653 = vmatprep.subr.mxu0 0.0
          %1654 = vmatpush2.xpose.msra.mxu0 0.0
          %1655 = vmatprep.subr.mxu0 0.0
          %1656 = vmatpush2.xpose.msra.mxu0 0.0
          %1657 = vmatprep.subr.mxu0 0.0
          %1658 = vmatpush2.xpose.msra.mxu0 0.0
          %1659 = vmatprep.subr.mxu0 0.0
          %1660 = vmatpush2.xpose.msra.mxu0 0.0
          %1661 = vmatprep.subr.mxu0 0.0
          %1662 = vmatpush2.xpose.msra.mxu0 0.0
          %1663 = vmatprep.subr.mxu0 0.0
          %1664 = vmatpush2.xpose.msra.mxu0 0.0
          %1665 = vmatprep.mubr.f32.mxu0 0.0
          %1666 = vmatmul.mubr.f32.gmra.mxu0 %v1590
          %v1667 = vpop.f32.mrf.mxu0
          %v1668 = vadd.f32 0.0, %v1667
          %v1669 = vpop.f32.mrf.mxu0
          %1670 = vmatprep.mubr.f32.mxu0 0.0
          %1671 = vmatmul.mubr.f32.gmra.mxu0 %v1593
          %v1672 = vpop.f32.mrf.mxu0
          %v1673 = vadd.f32 0.0, %v1672
          %v1674 = vpop.f32.mrf.mxu0
          %1675 = vdwg.mxu0
          %v1676 = vlaneseq
          %v1677 = vshrl.u32 %v1676, 7
          %v1678 = vadd.s32 %v1677, 8
          %v1679 = vlaneseq
          %v1680 = vand.u32 %v1679, 127
          %vm1681 = vcmp.ge.s32.totalorder %v1677, %v1680
          %vm1682 = vcmp.ge.s32.totalorder %v1678, %v1680
          %v1683 = vsel %vm1681, 1, 0
          %v1684 = vsel %vm1682, 1, 0
          %vm1685 = vcmp.eq.s32.totalorder %v1683, 1
          %vm1686 = vcmp.eq.s32.totalorder %v1684, 1
          %v1687 = vsel %vm1685, %v1407, -1e+10
          %v1688 = vsel %vm1686, %v1412, -1e+10
          %v1689 = vsel %vm1685, %v1494, -1e+10
          %v1690 = vsel %vm1686, %v1499, -1e+10
          %v1691 = vsel %vm1685, %v1581, -1e+10
          %v1692 = vsel %vm1686, %v1586, -1e+10
          %v1693 = vsel %vm1685, %v1668, -1e+10
          %v1694 = vsel %vm1686, %v1673, -1e+10
          %v1695 = vld [vmem:[#allocation2] sm:$0xff]
          %v1696 = vld [vmem:[#allocation2 + $0x8] sm:$0xff]
          %v1697 = vld [vmem:[#allocation2 + $0x10] sm:$0xff]
          %v1698 = vld [vmem:[#allocation2 + $0x18] sm:$0xff]
          %v1699 = vld [vmem:[#allocation2 + $0x20] sm:$0xff]
          %v1700 = vld [vmem:[#allocation2 + $0x28] sm:$0xff]
          %v1701 = vld [vmem:[#allocation2 + $0x30] sm:$0xff]
          %v1702 = vld [vmem:[#allocation2 + $0x38] sm:$0xff]
          %vm1703 = vcmask 130048
          %v1704 = vsel %vm1703, %v1687, -inf
          %1705 = vmax.xlane.f32.xlu0 %v1704
          %v1706 = vpop.xlane.xlu0 %1705
          %v1707 = vsel %vm1703, %v1688, -inf
          %1708 = vmax.xlane.f32.xlu0 %v1707
          %v1709 = vpop.xlane.xlu0 %1708
          %v1710 = vsel %vm1703, %v1689, -inf
          %1711 = vmax.xlane.f32.xlu0 %v1710
          %v1712 = vpop.xlane.xlu0 %1711
          %v1713 = vsel %vm1703, %v1690, -inf
          %1714 = vmax.xlane.f32.xlu0 %v1713
          %v1715 = vpop.xlane.xlu0 %1714
          %v1716 = vsel %vm1703, %v1691, -inf
          %1717 = vmax.xlane.f32.xlu0 %v1716
          %v1718 = vpop.xlane.xlu0 %1717
          %v1719 = vsel %vm1703, %v1692, -inf
          %1720 = vmax.xlane.f32.xlu0 %v1719
          %v1721 = vpop.xlane.xlu0 %1720
          %v1722 = vsel %vm1703, %v1693, -inf
          %1723 = vmax.xlane.f32.xlu0 %v1722
          %v1724 = vpop.xlane.xlu0 %1723
          %v1725 = vsel %vm1703, %v1694, -inf
          %1726 = vmax.xlane.f32.xlu0 %v1725
          %v1727 = vpop.xlane.xlu0 %1726
          %v1728 = vmax.f32 %v1695, %v1706
          %v1729 = vmax.f32 %v1696, %v1709
          %v1730 = vmax.f32 %v1697, %v1712
          %v1731 = vmax.f32 %v1698, %v1715
          %v1732 = vmax.f32 %v1699, %v1718
          %v1733 = vmax.f32 %v1700, %v1721
          %v1734 = vmax.f32 %v1701, %v1724
          %v1735 = vmax.f32 %v1702, %v1727
          %v1736 = vsub.f32 %v1695, %v1728
          %v1737 = vsub.f32 %v1696, %v1729
          %v1738 = vsub.f32 %v1697, %v1730
          %v1739 = vsub.f32 %v1698, %v1731
          %v1740 = vsub.f32 %v1699, %v1732
          %v1741 = vsub.f32 %v1700, %v1733
          %v1742 = vsub.f32 %v1701, %v1734
          %v1743 = vsub.f32 %v1702, %v1735
          %v1744 = vmul.f32 %v1736, 1.442695
          %v1745 = vpow.pop %v1744
          %v1746 = vmul.f32 %v1737, 1.442695
          %v1747 = vpow.pop %v1746
          %v1748 = vmul.f32 %v1738, 1.442695
          %v1749 = vpow.pop %v1748
          %v1750 = vmul.f32 %v1739, 1.442695
          %v1751 = vpow.pop %v1750
          %v1752 = vmul.f32 %v1740, 1.442695
          %v1753 = vpow.pop %v1752
          %v1754 = vmul.f32 %v1741, 1.442695
          %v1755 = vpow.pop %v1754
          %v1756 = vmul.f32 %v1742, 1.442695
          %v1757 = vpow.pop %v1756
          %v1758 = vmul.f32 %v1743, 1.442695
          %v1759 = vpow.pop %v1758
          %1761 = vset.pattern.permute.xlu0 0
          %1762 = vperm.xlu0 %1761, %v1728
          %v1763 = vpop.permute.xlu0 %1762
          %1766 = vset.pattern.permute.xlu0 0
          %1767 = vperm.xlu0 %1766, %v1729
          %v1768 = vpop.permute.xlu0 %1767
          %1771 = vset.pattern.permute.xlu0 0
          %1772 = vperm.xlu0 %1771, %v1730
          %v1773 = vpop.permute.xlu0 %1772
          %1776 = vset.pattern.permute.xlu0 0
          %1777 = vperm.xlu0 %1776, %v1731
          %v1778 = vpop.permute.xlu0 %1777
          %1781 = vset.pattern.permute.xlu0 0
          %1782 = vperm.xlu0 %1781, %v1732
          %v1783 = vpop.permute.xlu0 %1782
          %1786 = vset.pattern.permute.xlu0 0
          %1787 = vperm.xlu0 %1786, %v1733
          %v1788 = vpop.permute.xlu0 %1787
          %1791 = vset.pattern.permute.xlu0 0
          %1792 = vperm.xlu0 %1791, %v1734
          %v1793 = vpop.permute.xlu0 %1792
          %1796 = vset.pattern.permute.xlu0 0
          %1797 = vperm.xlu0 %1796, %v1735
          %v1798 = vpop.permute.xlu0 %1797
          %v1800 = vsub.f32 %v1687, %v1763
          %v1801 = vsub.f32 %v1688, %v1768
          %v1802 = vsub.f32 %v1689, %v1773
          %v1803 = vsub.f32 %v1690, %v1778
          %v1804 = vsub.f32 %v1691, %v1783
          %v1805 = vsub.f32 %v1692, %v1788
          %v1806 = vsub.f32 %v1693, %v1793
          %v1807 = vsub.f32 %v1694, %v1798
          %v1808 = vmul.f32 %v1800, 1.442695
          %v1809 = vpow.pop %v1808
          %v1810 = vmul.f32 %v1801, 1.442695
          %v1811 = vpow.pop %v1810
          %v1812 = vmul.f32 %v1802, 1.442695
          %v1813 = vpow.pop %v1812
          %v1814 = vmul.f32 %v1803, 1.442695
          %v1815 = vpow.pop %v1814
          %v1816 = vmul.f32 %v1804, 1.442695
          %v1817 = vpow.pop %v1816
          %v1818 = vmul.f32 %v1805, 1.442695
          %v1819 = vpow.pop %v1818
          %v1820 = vmul.f32 %v1806, 1.442695
          %v1821 = vpow.pop %v1820
          %v1822 = vmul.f32 %v1807, 1.442695
          %v1823 = vpow.pop %v1822
          %v1824 = vld [vmem:[#allocation3] sm:$0xff]
          %v1825 = vld [vmem:[#allocation3 + $0x8] sm:$0xff]
          %v1826 = vld [vmem:[#allocation3 + $0x10] sm:$0xff]
          %v1827 = vld [vmem:[#allocation3 + $0x18] sm:$0xff]
          %v1828 = vld [vmem:[#allocation3 + $0x20] sm:$0xff]
          %v1829 = vld [vmem:[#allocation3 + $0x28] sm:$0xff]
          %v1830 = vld [vmem:[#allocation3 + $0x30] sm:$0xff]
          %v1831 = vld [vmem:[#allocation3 + $0x38] sm:$0xff]
          %v1832 = vmul.f32 %v1745, %v1824
          %v1833 = vmul.f32 %v1747, %v1825
          %v1834 = vmul.f32 %v1749, %v1826
          %v1835 = vmul.f32 %v1751, %v1827
          %v1836 = vmul.f32 %v1753, %v1828
          %v1837 = vmul.f32 %v1755, %v1829
          %v1838 = vmul.f32 %v1757, %v1830
          %v1839 = vmul.f32 %v1759, %v1831
          %v1840 = vsel %vm1703, %v1809, 0.0
          %1841 = vadd.xlane.f32.xlu0 %v1840
          %v1842 = vpop.xlane.xlu0 %1841
          %v1843 = vsel %vm1703, %v1811, 0.0
          %1844 = vadd.xlane.f32.xlu0 %v1843
          %v1845 = vpop.xlane.xlu0 %1844
          %v1846 = vsel %vm1703, %v1813, 0.0
          %1847 = vadd.xlane.f32.xlu0 %v1846
          %v1848 = vpop.xlane.xlu0 %1847
          %v1849 = vsel %vm1703, %v1815, 0.0
          %1850 = vadd.xlane.f32.xlu0 %v1849
          %v1851 = vpop.xlane.xlu0 %1850
          %v1852 = vsel %vm1703, %v1817, 0.0
          %1853 = vadd.xlane.f32.xlu0 %v1852
          %v1854 = vpop.xlane.xlu0 %1853
          %v1855 = vsel %vm1703, %v1819, 0.0
          %1856 = vadd.xlane.f32.xlu0 %v1855
          %v1857 = vpop.xlane.xlu0 %1856
          %v1858 = vsel %vm1703, %v1821, 0.0
          %1859 = vadd.xlane.f32.xlu0 %v1858
          %v1860 = vpop.xlane.xlu0 %1859
          %v1861 = vsel %vm1703, %v1823, 0.0
          %1862 = vadd.xlane.f32.xlu0 %v1861
          %v1863 = vpop.xlane.xlu0 %1862
          %v1864 = vadd.f32 %v1832, %v1842
          %v1865 = vadd.f32 %v1833, %v1845
          %v1866 = vadd.f32 %v1834, %v1848
          %v1867 = vadd.f32 %v1835, %v1851
          %v1868 = vadd.f32 %v1836, %v1854
          %v1869 = vadd.f32 %v1837, %v1857
          %v1870 = vadd.f32 %v1838, %v1860
          %v1871 = vadd.f32 %v1839, %v1863
          %vm1872 = vcmask 7168
          %1873 = vst.msk [vmem:[#allocation3] sm:$0xff] %vm1872, %v1864
          %1874 = vst.msk [vmem:[#allocation3 + $0x8] sm:$0xff] %vm1872, %v1865
          %1875 = vst.msk [vmem:[#allocation3 + $0x10] sm:$0xff] %vm1872, %v1866
          %1876 = vst.msk [vmem:[#allocation3 + $0x18] sm:$0xff] %vm1872, %v1867
          %1877 = vst.msk [vmem:[#allocation3 + $0x20] sm:$0xff] %vm1872, %v1868
          %1878 = vst.msk [vmem:[#allocation3 + $0x28] sm:$0xff] %vm1872, %v1869
          %1879 = vst.msk [vmem:[#allocation3 + $0x30] sm:$0xff] %vm1872, %v1870
          %1880 = vst.msk [vmem:[#allocation3 + $0x38] sm:$0xff] %vm1872, %v1871
          %v1881 = vld [vmem:[#allocation4] sm:$0xff]
          %v1882 = vld [vmem:[#allocation4 + $0x8] sm:$0xff]
          %v1883 = vld [vmem:[#allocation4 + $0x10] sm:$0xff]
          %v1884 = vld [vmem:[#allocation4 + $0x18] sm:$0xff]
          %v1885 = vld [vmem:[#allocation4 + $0x20] sm:$0xff]
          %v1886 = vld [vmem:[#allocation4 + $0x28] sm:$0xff]
          %v1887 = vld [vmem:[#allocation4 + $0x30] sm:$0xff]
          %v1888 = vld [vmem:[#allocation4 + $0x38] sm:$0xff]
          %1890 = vset.pattern.permute.xlu0 0
          %1891 = vperm.xlu0 %1890, %v1745
          %v1892 = vpop.permute.xlu0 %1891
          %1895 = vset.pattern.permute.xlu0 0
          %1896 = vperm.xlu0 %1895, %v1747
          %v1897 = vpop.permute.xlu0 %1896
          %1900 = vset.pattern.permute.xlu0 0
          %1901 = vperm.xlu0 %1900, %v1749
          %v1902 = vpop.permute.xlu0 %1901
          %1905 = vset.pattern.permute.xlu0 0
          %1906 = vperm.xlu0 %1905, %v1751
          %v1907 = vpop.permute.xlu0 %1906
          %1910 = vset.pattern.permute.xlu0 0
          %1911 = vperm.xlu0 %1910, %v1753
          %v1912 = vpop.permute.xlu0 %1911
          %1915 = vset.pattern.permute.xlu0 0
          %1916 = vperm.xlu0 %1915, %v1755
          %v1917 = vpop.permute.xlu0 %1916
          %1920 = vset.pattern.permute.xlu0 0
          %1921 = vperm.xlu0 %1920, %v1757
          %v1922 = vpop.permute.xlu0 %1921
          %1925 = vset.pattern.permute.xlu0 0
          %1926 = vperm.xlu0 %1925, %v1759
          %v1927 = vpop.permute.xlu0 %1926
          %v1929 = vmul.f32 %v1892, %v1881
          %v1930 = vmul.f32 %v1897, %v1882
          %v1931 = vmul.f32 %v1902, %v1883
          %v1932 = vmul.f32 %v1907, %v1884
          %v1933 = vmul.f32 %v1912, %v1885
          %v1934 = vmul.f32 %v1917, %v1886
          %v1935 = vmul.f32 %v1922, %v1887
          %v1936 = vmul.f32 %v1927, %v1888
          %v1938 = vsel %vm1703, %v1809, 0
          %v1941 = vsel %vm1703, %v1811, 0
          %1943 = vmatprep.subr.mxu0 0.0
          %1944 = vmatpush1.msra.mxu0 0.0
          %1945 = vmatprep.subr.mxu0 0.0
          %1946 = vmatpush1.msra.mxu0 0.0
          %1947 = vmatprep.subr.mxu0 0.0
          %1948 = vmatpush1.msra.mxu0 0.0
          %1949 = vmatprep.subr.mxu0 0.0
          %1950 = vmatpush1.msra.mxu0 0.0
          %1951 = vmatprep.subr.mxu0 0.0
          %1952 = vmatpush1.msra.mxu0 0.0
          %1953 = vmatprep.subr.mxu0 0.0
          %1954 = vmatpush1.msra.mxu0 0.0
          %1955 = vmatprep.subr.mxu0 0.0
          %1956 = vmatpush1.msra.mxu0 0.0
          %1957 = vmatprep.subr.mxu0 0.0
          %1958 = vmatpush1.msra.mxu0 0.0
          %1959 = vmatprep.subr.mxu0 0.0
          %1960 = vmatpush1.msra.mxu0 0.0
          %1961 = vmatprep.subr.mxu0 0.0
          %1962 = vmatpush1.msra.mxu0 0.0
          %1963 = vmatprep.subr.mxu0 0.0
          %1964 = vmatpush1.msra.mxu0 0.0
          %1965 = vmatprep.subr.mxu0 0.0
          %1966 = vmatpush1.msra.mxu0 0.0
          %1967 = vmatprep.subr.mxu0 0.0
          %1968 = vmatpush1.msra.mxu0 0.0
          %1969 = vmatprep.subr.mxu0 0.0
          %1970 = vmatpush1.msra.mxu0 0.0
          %1971 = vmatprep.subr.mxu0 0.0
          %1972 = vmatpush1.msra.mxu0 %v1320
          %1973 = vmatprep.subr.mxu0 0.0
          %1974 = vmatpush1.msra.mxu0 %v1319
          %1975 = vmatprep.subr.mxu0 0.0
          %1976 = vmatpush2.msra.mxu0 0.0
          %1977 = vmatprep.subr.mxu0 0.0
          %1978 = vmatpush2.msra.mxu0 0.0
          %1979 = vmatprep.subr.mxu0 0.0
          %1980 = vmatpush2.msra.mxu0 0.0
          %1981 = vmatprep.subr.mxu0 0.0
          %1982 = vmatpush2.msra.mxu0 0.0
          %1983 = vmatprep.subr.mxu0 0.0
          %1984 = vmatpush2.msra.mxu0 0.0
          %1985 = vmatprep.subr.mxu0 0.0
          %1986 = vmatpush2.msra.mxu0 0.0
          %1987 = vmatprep.subr.mxu0 0.0
          %1988 = vmatpush2.msra.mxu0 0.0
          %1989 = vmatprep.subr.mxu0 0.0
          %1990 = vmatpush2.msra.mxu0 0.0
          %1991 = vmatprep.subr.mxu0 0.0
          %1992 = vmatpush2.msra.mxu0 0.0
          %1993 = vmatprep.subr.mxu0 0.0
          %1994 = vmatpush2.msra.mxu0 0.0
          %1995 = vmatprep.subr.mxu0 0.0
          %1996 = vmatpush2.msra.mxu0 0.0
          %1997 = vmatprep.subr.mxu0 0.0
          %1998 = vmatpush2.msra.mxu0 0.0
          %1999 = vmatprep.subr.mxu0 0.0
          %2000 = vmatpush2.msra.mxu0 0.0
          %2001 = vmatprep.subr.mxu0 0.0
          %2002 = vmatpush2.msra.mxu0 0.0
          %2003 = vmatprep.subr.mxu0 0.0
          %2004 = vmatpush2.msra.mxu0 0.0
          %2005 = vmatprep.subr.mxu0 0.0
          %2006 = vmatpush2.msra.mxu0 0.0
          %2007 = vmatprep.mubr.f32.mxu0 0.0
          %2008 = vmatmul.mubr.f32.gmra.mxu0 %v1938
          %v2009 = vpop.f32.mrf.mxu0
          %v2010 = vadd.f32 0.0, %v2009
          %v2011 = vpop.f32.mrf.mxu0
          %2012 = vmatprep.mubr.f32.mxu0 0.0
          %2013 = vmatmul.mubr.f32.gmra.mxu0 %v1941
          %v2014 = vpop.f32.mrf.mxu0
          %v2015 = vadd.f32 0.0, %v2014
          %v2016 = vpop.f32.mrf.mxu0
          %2017 = vdwg.mxu0
          %v2019 = vsel %vm1703, %v1813, 0
          %v2022 = vsel %vm1703, %v1815, 0
          %2024 = vmatprep.subr.mxu0 0.0
          %2025 = vmatpush1.msra.mxu0 0.0
          %2026 = vmatprep.subr.mxu0 0.0
          %2027 = vmatpush1.msra.mxu0 0.0
          %2028 = vmatprep.subr.mxu0 0.0
          %2029 = vmatpush1.msra.mxu0 0.0
          %2030 = vmatprep.subr.mxu0 0.0
          %2031 = vmatpush1.msra.mxu0 0.0
          %2032 = vmatprep.subr.mxu0 0.0
          %2033 = vmatpush1.msra.mxu0 0.0
          %2034 = vmatprep.subr.mxu0 0.0
          %2035 = vmatpush1.msra.mxu0 0.0
          %2036 = vmatprep.subr.mxu0 0.0
          %2037 = vmatpush1.msra.mxu0 0.0
          %2038 = vmatprep.subr.mxu0 0.0
          %2039 = vmatpush1.msra.mxu0 0.0
          %2040 = vmatprep.subr.mxu0 0.0
          %2041 = vmatpush1.msra.mxu0 0.0
          %2042 = vmatprep.subr.mxu0 0.0
          %2043 = vmatpush1.msra.mxu0 0.0
          %2044 = vmatprep.subr.mxu0 0.0
          %2045 = vmatpush1.msra.mxu0 0.0
          %2046 = vmatprep.subr.mxu0 0.0
          %2047 = vmatpush1.msra.mxu0 0.0
          %2048 = vmatprep.subr.mxu0 0.0
          %2049 = vmatpush1.msra.mxu0 0.0
          %2050 = vmatprep.subr.mxu0 0.0
          %2051 = vmatpush1.msra.mxu0 0.0
          %2052 = vmatprep.subr.mxu0 0.0
          %2053 = vmatpush1.msra.mxu0 %v1322
          %2054 = vmatprep.subr.mxu0 0.0
          %2055 = vmatpush1.msra.mxu0 %v1321
          %2056 = vmatprep.subr.mxu0 0.0
          %2057 = vmatpush2.msra.mxu0 0.0
          %2058 = vmatprep.subr.mxu0 0.0
          %2059 = vmatpush2.msra.mxu0 0.0
          %2060 = vmatprep.subr.mxu0 0.0
          %2061 = vmatpush2.msra.mxu0 0.0
          %2062 = vmatprep.subr.mxu0 0.0
          %2063 = vmatpush2.msra.mxu0 0.0
          %2064 = vmatprep.subr.mxu0 0.0
          %2065 = vmatpush2.msra.mxu0 0.0
          %2066 = vmatprep.subr.mxu0 0.0
          %2067 = vmatpush2.msra.mxu0 0.0
          %2068 = vmatprep.subr.mxu0 0.0
          %2069 = vmatpush2.msra.mxu0 0.0
          %2070 = vmatprep.subr.mxu0 0.0
          %2071 = vmatpush2.msra.mxu0 0.0
          %2072 = vmatprep.subr.mxu0 0.0
          %2073 = vmatpush2.msra.mxu0 0.0
          %2074 = vmatprep.subr.mxu0 0.0
          %2075 = vmatpush2.msra.mxu0 0.0
          %2076 = vmatprep.subr.mxu0 0.0
          %2077 = vmatpush2.msra.mxu0 0.0
          %2078 = vmatprep.subr.mxu0 0.0
          %2079 = vmatpush2.msra.mxu0 0.0
          %2080 = vmatprep.subr.mxu0 0.0
          %2081 = vmatpush2.msra.mxu0 0.0
          %2082 = vmatprep.subr.mxu0 0.0
          %2083 = vmatpush2.msra.mxu0 0.0
          %2084 = vmatprep.subr.mxu0 0.0
          %2085 = vmatpush2.msra.mxu0 0.0
          %2086 = vmatprep.subr.mxu0 0.0
          %2087 = vmatpush2.msra.mxu0 0.0
          %2088 = vmatprep.mubr.f32.mxu0 0.0
          %2089 = vmatmul.mubr.f32.gmra.mxu0 %v2019
          %v2090 = vpop.f32.mrf.mxu0
          %v2091 = vadd.f32 0.0, %v2090
          %v2092 = vpop.f32.mrf.mxu0
          %2093 = vmatprep.mubr.f32.mxu0 0.0
          %2094 = vmatmul.mubr.f32.gmra.mxu0 %v2022
          %v2095 = vpop.f32.mrf.mxu0
          %v2096 = vadd.f32 0.0, %v2095
          %v2097 = vpop.f32.mrf.mxu0
          %2098 = vdwg.mxu0
          %v2100 = vsel %vm1703, %v1817, 0
          %v2103 = vsel %vm1703, %v1819, 0
          %2105 = vmatprep.subr.mxu0 0.0
          %2106 = vmatpush1.msra.mxu0 0.0
          %2107 = vmatprep.subr.mxu0 0.0
          %2108 = vmatpush1.msra.mxu0 0.0
          %2109 = vmatprep.subr.mxu0 0.0
          %2110 = vmatpush1.msra.mxu0 0.0
          %2111 = vmatprep.subr.mxu0 0.0
          %2112 = vmatpush1.msra.mxu0 0.0
          %2113 = vmatprep.subr.mxu0 0.0
          %2114 = vmatpush1.msra.mxu0 0.0
          %2115 = vmatprep.subr.mxu0 0.0
          %2116 = vmatpush1.msra.mxu0 0.0
          %2117 = vmatprep.subr.mxu0 0.0
          %2118 = vmatpush1.msra.mxu0 0.0
          %2119 = vmatprep.subr.mxu0 0.0
          %2120 = vmatpush1.msra.mxu0 0.0
          %2121 = vmatprep.subr.mxu0 0.0
          %2122 = vmatpush1.msra.mxu0 0.0
          %2123 = vmatprep.subr.mxu0 0.0
          %2124 = vmatpush1.msra.mxu0 0.0
          %2125 = vmatprep.subr.mxu0 0.0
          %2126 = vmatpush1.msra.mxu0 0.0
          %2127 = vmatprep.subr.mxu0 0.0
          %2128 = vmatpush1.msra.mxu0 0.0
          %2129 = vmatprep.subr.mxu0 0.0
          %2130 = vmatpush1.msra.mxu0 0.0
          %2131 = vmatprep.subr.mxu0 0.0
          %2132 = vmatpush1.msra.mxu0 0.0
          %2133 = vmatprep.subr.mxu0 0.0
          %2134 = vmatpush1.msra.mxu0 %v1324
          %2135 = vmatprep.subr.mxu0 0.0
          %2136 = vmatpush1.msra.mxu0 %v1323
          %2137 = vmatprep.subr.mxu0 0.0
          %2138 = vmatpush2.msra.mxu0 0.0
          %2139 = vmatprep.subr.mxu0 0.0
          %2140 = vmatpush2.msra.mxu0 0.0
          %2141 = vmatprep.subr.mxu0 0.0
          %2142 = vmatpush2.msra.mxu0 0.0
          %2143 = vmatprep.subr.mxu0 0.0
          %2144 = vmatpush2.msra.mxu0 0.0
          %2145 = vmatprep.subr.mxu0 0.0
          %2146 = vmatpush2.msra.mxu0 0.0
          %2147 = vmatprep.subr.mxu0 0.0
          %2148 = vmatpush2.msra.mxu0 0.0
          %2149 = vmatprep.subr.mxu0 0.0
          %2150 = vmatpush2.msra.mxu0 0.0
          %2151 = vmatprep.subr.mxu0 0.0
          %2152 = vmatpush2.msra.mxu0 0.0
          %2153 = vmatprep.subr.mxu0 0.0
          %2154 = vmatpush2.msra.mxu0 0.0
          %2155 = vmatprep.subr.mxu0 0.0
          %2156 = vmatpush2.msra.mxu0 0.0
          %2157 = vmatprep.subr.mxu0 0.0
          %2158 = vmatpush2.msra.mxu0 0.0
          %2159 = vmatprep.subr.mxu0 0.0
          %2160 = vmatpush2.msra.mxu0 0.0
          %2161 = vmatprep.subr.mxu0 0.0
          %2162 = vmatpush2.msra.mxu0 0.0
          %2163 = vmatprep.subr.mxu0 0.0
          %2164 = vmatpush2.msra.mxu0 0.0
          %2165 = vmatprep.subr.mxu0 0.0
          %2166 = vmatpush2.msra.mxu0 0.0
          %2167 = vmatprep.subr.mxu0 0.0
          %2168 = vmatpush2.msra.mxu0 0.0
          %2169 = vmatprep.mubr.f32.mxu0 0.0
          %2170 = vmatmul.mubr.f32.gmra.mxu0 %v2100
          %v2171 = vpop.f32.mrf.mxu0
          %v2172 = vadd.f32 0.0, %v2171
          %v2173 = vpop.f32.mrf.mxu0
          %2174 = vmatprep.mubr.f32.mxu0 0.0
          %2175 = vmatmul.mubr.f32.gmra.mxu0 %v2103
          %v2176 = vpop.f32.mrf.mxu0
          %v2177 = vadd.f32 0.0, %v2176
          %v2178 = vpop.f32.mrf.mxu0
          %2179 = vdwg.mxu0
          %v2181 = vsel %vm1703, %v1821, 0
          %v2184 = vsel %vm1703, %v1823, 0
          %2186 = vmatprep.subr.mxu0 0.0
          %2187 = vmatpush1.msra.mxu0 0.0
          %2188 = vmatprep.subr.mxu0 0.0
          %2189 = vmatpush1.msra.mxu0 0.0
          %2190 = vmatprep.subr.mxu0 0.0
          %2191 = vmatpush1.msra.mxu0 0.0
          %2192 = vmatprep.subr.mxu0 0.0
          %2193 = vmatpush1.msra.mxu0 0.0
          %2194 = vmatprep.subr.mxu0 0.0
          %2195 = vmatpush1.msra.mxu0 0.0
          %2196 = vmatprep.subr.mxu0 0.0
          %2197 = vmatpush1.msra.mxu0 0.0
          %2198 = vmatprep.subr.mxu0 0.0
          %2199 = vmatpush1.msra.mxu0 0.0
          %2200 = vmatprep.subr.mxu0 0.0
          %2201 = vmatpush1.msra.mxu0 0.0
          %2202 = vmatprep.subr.mxu0 0.0
          %2203 = vmatpush1.msra.mxu0 0.0
          %2204 = vmatprep.subr.mxu0 0.0
          %2205 = vmatpush1.msra.mxu0 0.0
          %2206 = vmatprep.subr.mxu0 0.0
          %2207 = vmatpush1.msra.mxu0 0.0
          %2208 = vmatprep.subr.mxu0 0.0
          %2209 = vmatpush1.msra.mxu0 0.0
          %2210 = vmatprep.subr.mxu0 0.0
          %2211 = vmatpush1.msra.mxu0 0.0
          %2212 = vmatprep.subr.mxu0 0.0
          %2213 = vmatpush1.msra.mxu0 0.0
          %2214 = vmatprep.subr.mxu0 0.0
          %2215 = vmatpush1.msra.mxu0 %v1326
          %2216 = vmatprep.subr.mxu0 0.0
          %2217 = vmatpush1.msra.mxu0 %v1325
          %2218 = vmatprep.subr.mxu0 0.0
          %2219 = vmatpush2.msra.mxu0 0.0
          %2220 = vmatprep.subr.mxu0 0.0
          %2221 = vmatpush2.msra.mxu0 0.0
          %2222 = vmatprep.subr.mxu0 0.0
          %2223 = vmatpush2.msra.mxu0 0.0
          %2224 = vmatprep.subr.mxu0 0.0
          %2225 = vmatpush2.msra.mxu0 0.0
          %2226 = vmatprep.subr.mxu0 0.0
          %2227 = vmatpush2.msra.mxu0 0.0
          %2228 = vmatprep.subr.mxu0 0.0
          %2229 = vmatpush2.msra.mxu0 0.0
          %2230 = vmatprep.subr.mxu0 0.0
          %2231 = vmatpush2.msra.mxu0 0.0
          %2232 = vmatprep.subr.mxu0 0.0
          %2233 = vmatpush2.msra.mxu0 0.0
          %2234 = vmatprep.subr.mxu0 0.0
          %2235 = vmatpush2.msra.mxu0 0.0
          %2236 = vmatprep.subr.mxu0 0.0
          %2237 = vmatpush2.msra.mxu0 0.0
          %2238 = vmatprep.subr.mxu0 0.0
          %2239 = vmatpush2.msra.mxu0 0.0
          %2240 = vmatprep.subr.mxu0 0.0
          %2241 = vmatpush2.msra.mxu0 0.0
          %2242 = vmatprep.subr.mxu0 0.0
          %2243 = vmatpush2.msra.mxu0 0.0
          %2244 = vmatprep.subr.mxu0 0.0
          %2245 = vmatpush2.msra.mxu0 0.0
          %2246 = vmatprep.subr.mxu0 0.0
          %2247 = vmatpush2.msra.mxu0 0.0
          %2248 = vmatprep.subr.mxu0 0.0
          %2249 = vmatpush2.msra.mxu0 0.0
          %2250 = vmatprep.mubr.f32.mxu0 0.0
          %2251 = vmatmul.mubr.f32.gmra.mxu0 %v2181
          %v2252 = vpop.f32.mrf.mxu0
          %v2253 = vadd.f32 0.0, %v2252
          %v2254 = vpop.f32.mrf.mxu0
          %2255 = vmatprep.mubr.f32.mxu0 0.0
          %2256 = vmatmul.mubr.f32.gmra.mxu0 %v2184
          %v2257 = vpop.f32.mrf.mxu0
          %v2258 = vadd.f32 0.0, %v2257
          %v2259 = vpop.f32.mrf.mxu0
          %2260 = vdwg.mxu0
          %v2261 = vadd.f32 %v1929, %v2010
          %v2262 = vadd.f32 %v1930, %v2015
          %v2263 = vadd.f32 %v1931, %v2091
          %v2264 = vadd.f32 %v1932, %v2096
          %v2265 = vadd.f32 %v1933, %v2172
          %v2266 = vadd.f32 %v1934, %v2177
          %v2267 = vadd.f32 %v1935, %v2253
          %v2268 = vadd.f32 %v1936, %v2258
          %2269 = vst.msk [vmem:[#allocation4] sm:$0xff] %vm1327, %v2261
          %2270 = vst.msk [vmem:[#allocation4 + $0x8] sm:$0xff] %vm1327, %v2262
          %2271 = vst.msk [vmem:[#allocation4 + $0x10] sm:$0xff] %vm1327, %v2263
          %2272 = vst.msk [vmem:[#allocation4 + $0x18] sm:$0xff] %vm1327, %v2264
          %2273 = vst.msk [vmem:[#allocation4 + $0x20] sm:$0xff] %vm1327, %v2265
          %2274 = vst.msk [vmem:[#allocation4 + $0x28] sm:$0xff] %vm1327, %v2266
          %2275 = vst.msk [vmem:[#allocation4 + $0x30] sm:$0xff] %vm1327, %v2267
          %2276 = vst.msk [vmem:[#allocation4 + $0x38] sm:$0xff] %vm1327, %v2268
          %2277 = vst.msk [vmem:[#allocation2] sm:$0xff] %vm1872, %v1728
          %2278 = vst.msk [vmem:[#allocation2 + $0x8] sm:$0xff] %vm1872, %v1729
          %2279 = vst.msk [vmem:[#allocation2 + $0x10] sm:$0xff] %vm1872, %v1730
          %2280 = vst.msk [vmem:[#allocation2 + $0x18] sm:$0xff] %vm1872, %v1731
          %2281 = vst.msk [vmem:[#allocation2 + $0x20] sm:$0xff] %vm1872, %v1732
          %2282 = vst.msk [vmem:[#allocation2 + $0x28] sm:$0xff] %vm1872, %v1733
          %2283 = vst.msk [vmem:[#allocation2 + $0x30] sm:$0xff] %vm1872, %v1734
          %2284 = vst.msk [vmem:[#allocation2 + $0x38] sm:$0xff] %vm1872, %v1735
          %v2285 = vld [vmem:[#allocation3] sm:$0xff]
          %v2286 = vld [vmem:[#allocation3 + $0x8] sm:$0xff]
          %v2287 = vld [vmem:[#allocation3 + $0x10] sm:$0xff]
          %v2288 = vld [vmem:[#allocation3 + $0x18] sm:$0xff]
          %v2289 = vld [vmem:[#allocation3 + $0x20] sm:$0xff]
          %v2290 = vld [vmem:[#allocation3 + $0x28] sm:$0xff]
          %v2291 = vld [vmem:[#allocation3 + $0x30] sm:$0xff]
          %v2292 = vld [vmem:[#allocation3 + $0x38] sm:$0xff]
          %v2293 = vrcp.pop %v2285
          %v2294 = vrcp.pop %v2286
          %v2295 = vrcp.pop %v2287
          %v2296 = vrcp.pop %v2288
          %v2297 = vrcp.pop %v2289
          %v2298 = vrcp.pop %v2290
          %v2299 = vrcp.pop %v2291
          %v2300 = vrcp.pop %v2292
          %v2301 = vld [vmem:[#allocation4] sm:$0xff]
          %v2302 = vld [vmem:[#allocation4 + $0x8] sm:$0xff]
          %v2303 = vld [vmem:[#allocation4 + $0x10] sm:$0xff]
          %v2304 = vld [vmem:[#allocation4 + $0x18] sm:$0xff]
          %v2305 = vld [vmem:[#allocation4 + $0x20] sm:$0xff]
          %v2306 = vld [vmem:[#allocation4 + $0x28] sm:$0xff]
          %v2307 = vld [vmem:[#allocation4 + $0x30] sm:$0xff]
          %v2308 = vld [vmem:[#allocation4 + $0x38] sm:$0xff]
          %2310 = vset.pattern.permute.xlu0 0
          %2311 = vperm.xlu0 %2310, %v2293
          %v2312 = vpop.permute.xlu0 %2311
          %2315 = vset.pattern.permute.xlu0 0
          %2316 = vperm.xlu0 %2315, %v2294
          %v2317 = vpop.permute.xlu0 %2316
          %2320 = vset.pattern.permute.xlu0 0
          %2321 = vperm.xlu0 %2320, %v2295
          %v2322 = vpop.permute.xlu0 %2321
          %2325 = vset.pattern.permute.xlu0 0
          %2326 = vperm.xlu0 %2325, %v2296
          %v2327 = vpop.permute.xlu0 %2326
          %2330 = vset.pattern.permute.xlu0 0
          %2331 = vperm.xlu0 %2330, %v2297
          %v2332 = vpop.permute.xlu0 %2331
          %2335 = vset.pattern.permute.xlu0 0
          %2336 = vperm.xlu0 %2335, %v2298
          %v2337 = vpop.permute.xlu0 %2336
          %2340 = vset.pattern.permute.xlu0 0
          %2341 = vperm.xlu0 %2340, %v2299
          %v2342 = vpop.permute.xlu0 %2341
          %2345 = vset.pattern.permute.xlu0 0
          %2346 = vperm.xlu0 %2345, %v2300
          %v2347 = vpop.permute.xlu0 %2346
          %v2349 = vmul.f32 %v2301, %v2312
          %v2350 = vmul.f32 %v2302, %v2317
          %v2351 = vmul.f32 %v2303, %v2322
          %v2352 = vmul.f32 %v2304, %v2327
          %v2353 = vmul.f32 %v2305, %v2332
          %v2354 = vmul.f32 %v2306, %v2337
          %v2355 = vmul.f32 %v2307, %v2342
          %v2356 = vmul.f32 %v2308, %v2347
          %2359 = vrot.lane.b32.xlu0 %v2351, 8
          %v2360 = vpop.permute.xlu0 %2359
          %2361 = vrot.lane.b32.xlu0 %v2352, 8
          %v2362 = vpop.permute.xlu0 %2361
          %2367 = vrot.lane.b32.xlu0 %v2353, 16
          %v2368 = vpop.permute.xlu0 %2367
          %2369 = vrot.lane.b32.xlu0 %v2354, 16
          %v2370 = vpop.permute.xlu0 %2369
          %2375 = vrot.lane.b32.xlu0 %v2355, 24
          %v2376 = vpop.permute.xlu0 %2375
          %2377 = vrot.lane.b32.xlu0 %v2356, 24
          %v2378 = vpop.permute.xlu0 %2377
          %v2381 = vsel %vm1327, %v2349, %v2360
          %v2382 = vsel %vm1327, %v2350, %v2362
          %v2383 = vsel %vm1703, %v2381, %v2368
          %v2384 = vsel %vm1703, %v2382, %v2370
          %vm2385 = vcmask 195584
          %v2386 = vsel %vm2385, %v2383, %v2376
          %v2387 = vsel %vm2385, %v2384, %v2378
          %vm2388 = vcmask 261120
          %2389 = vst.msk [vmem:[%s261] sm:$0xff] %vm2388, %v2386
          %2390 = vst.msk [vmem:[%s261 + $0x8] sm:$0xff] %vm2388, %v2387
        $region44: #{tpu_custom_call.1} parent=31 // pred_fallthru
          _
        %s2391 = sand.u32 %s135, 1
        %s2392 = scalar_lea.sflag [#allocation9], %s2391
        %s2393 = sand.u32 %s135, 1
        %s2394 = smul.addr %s2393, 16
        %s2395 = scalar_lea.vmem [#allocation8], %s2394
        // Predicated region
        $region45: #{tpu_custom_call.1} parent=31 // pred_check
          %p2396 = pneg %p145
        $region46: #{tpu_custom_call.1} parent=31 // pred_check_branch
          %2398 = sbr.rel (%p2396) target = $region48
        $region47: #{tpu_custom_call.1} parent=31 // pred_region
          %s2399 = sld [smem:[#allocation6 + %s26]]
          %s2400 = smul.u32 2, %s2399
          %s2402 = ssub.s32 256, 256
          %2403 = vsyncadd %s2392, %s2402
          %s2404 = smul.addr %s25, 2
          %s2405 = sadd.s32 %s2400, %s2404
          %s2406 = smul.addr %s2405, 128
          %s2407 = scalar_lea.hbm %s5, %s2406
          %s2408 = sshll.u32 %s2395, 4
          %s2409 = int_to_ptr.vmem [resolvable:$true] %s2408
          %2414 = dma.vmem_to_hbm [thread:$0]  %s2409, 256, %s2407, %s2392, 128, 128, 8
        $region48: #{tpu_custom_call.1} parent=31 // pred_fallthru
          _
      $region32: #{tpu_custom_call.1} parent=5 // pred_fallthru
        _
      %p2415 = scmp.le.s32.totalorder 2, %s16
      // Predicated region
      $region49: #{tpu_custom_call.1} parent=5 // pred_check
        %p2416 = pneg %p2415
      $region50: #{tpu_custom_call.1} parent=5 // pred_check_branch
        %2418 = sbr.rel (%p2416) target = $region52
      $region51: #{tpu_custom_call.1} parent=5 // pred_region
        %s2419 = ssub.s32 %s16, 2
        // Predicated region
        $region53: #{tpu_custom_call.1} parent=51 // pred_check
          %p2420 = pneg %p151
        $region54: #{tpu_custom_call.1} parent=51 // pred_check_branch
          %2422 = sbr.rel (%p2420) target = $region56
        $region55: #{tpu_custom_call.1} parent=51 // pred_region
          %s2423 = sand.u32 %s136, 1
          %s2424 = scalar_lea.sflag [#allocation9], %s2423
          %s2425 = sand.u32 %s136, 1
          %s2426 = smul.addr %s2425, 16
          %s2427 = scalar_lea.vmem [#allocation8], %s2426
          %2428 = dma.done %s2424, 256
        $region56: #{tpu_custom_call.1} parent=51 // pred_fallthru
          _
      $region52: #{tpu_custom_call.1} parent=5 // pred_fallthru
        _
    $region6: #{tpu_custom_call.1} parent=1 // loop_footer
      %s20 = sadd.s32 1, %s16
    $region7: #{tpu_custom_call.1} parent=1 // loop_footer_branch
      %15 = sbr.rel target = $region3
    $region8: #{tpu_custom_call.1} parent=1 // loop_exit
      _
    %2429 = vsyncpa [#allocation9], 1
    %s2430 = scalar_lea.sflag [#allocation9], 1
    %2431 = vsyncpa %s2430, 1

</llo_original>
